<compile_context>
chip_gen: v7x
topology: tpu7x:2x2x1
jax: 0.10.0
libtpu: 0.0.40
codegen_flags: <defaults>
</compile_context>

<pallas_src>
import math
import functools

import jax
import jax.numpy as jnp
from jax.experimental import pallas as pl
from jax.experimental.pallas import tpu as pltpu


# ------------------------------ Pallas kernel -------------------------------

def _conv_bias_relu_kernel(x_ref, w_ref, b_ref, o_ref, *, K, stride, Ho, Wo,
                           compute_dtype):
    # x_ref: (Hp, Wp, Cin)      padded NHWC image (batch dim squeezed), f32
    # w_ref: (K*K, Cin, TCO)    weight slices per (kh, kw) tap, f32
    # b_ref: (1, TCO)           bias row, f32
    # o_ref: (Ho*Wo, TCO)       lane-dense output tile, f32
    cin = x_ref.shape[-1]
    tco = o_ref.shape[-1]
    acc = jnp.zeros((Ho * Wo, tco), jnp.float32)
    for kh in range(K):
        for kw in range(K):
            if stride == 1:
                xs = x_ref[kh:kh + Ho, kw:kw + Wo, :]
            else:
                xs = x_ref[pl.ds(kh, Ho, stride), pl.ds(kw, Wo, stride), :]
            xs = xs.reshape(Ho * Wo, cin).astype(compute_dtype)
            wk = w_ref[kh * K + kw].astype(compute_dtype)
            acc = acc + jnp.dot(xs, wk, preferred_element_type=jnp.float32)
    acc = acc + b_ref[...].astype(jnp.float32)
    o_ref[...] = jnp.maximum(acc, 0.0).astype(o_ref.dtype)


# ------------------------------- forward fn ---------------------------------

@functools.partial(jax.jit, static_argnames=("stride", "padding", "compute_dtype"))
def conv2d_block_forward(x, weight, bias, *, stride=1, padding=0,
                         compute_dtype=jnp.bfloat16):
    """x: (N, Cin, H, W) NCHW f32; weight: (Cout, Cin, K, K); bias: (Cout,)."""
    N, Cin, H, W = x.shape
    Cout, _, K, _ = weight.shape

    Hp, Wp = H + 2 * padding, W + 2 * padding
    Ho = (Hp - K) // stride + 1
    Wo = (Wp - K) // stride + 1

    # Lane-dense output channels.
    Coutp = ((Cout + 127) // 128) * 128
    TCO = 512 if Coutp % 512 == 0 else (256 if Coutp % 256 == 0 else 128)

    # One NCHW->NHWC pass on input; pad spatially (zeros, like Conv2d).
    x_nhwc = jnp.transpose(x, (0, 2, 3, 1))
    x_pad = jnp.pad(x_nhwc,
                    ((0, 0), (padding, padding), (padding, padding), (0, 0)))

    # (Cout, Cin, K, K) -> (K*K, Cin, Coutp): per-tap (Cin, Cout) matrices.
    wk = jnp.transpose(weight, (2, 3, 1, 0)).reshape(K * K, Cin, Cout)
    wk = jnp.pad(wk, ((0, 0), (0, 0), (0, Coutp - Cout)))
    b_row = jnp.pad(bias, (0, Coutp - Cout)).reshape(1, Coutp).astype(jnp.float32)

    # Explicit scoped-VMEM budget: double-buffered in/out/weight/bias blocks
    # plus the f32 accumulator, with headroom (floor 16 MiB, cap 64 MiB for v7x).
    in_b = Hp * Wp * Cin * 4
    w_b = K * K * Cin * TCO * 4
    bia_b = TCO * 4
    out_b = Ho * Wo * TCO * 4
    needed = 2 * (in_b + w_b + bia_b + out_b) + out_b
    vmem_limit = int(min(max(needed + (8 << 20), 16 << 20), 64 << 20))

    kern = functools.partial(_conv_bias_relu_kernel, K=K, stride=stride,
                             Ho=Ho, Wo=Wo, compute_dtype=compute_dtype)

    out_flat = pl.pallas_call(
        kern,
        out_shape=jax.ShapeDtypeStruct((N, Ho * Wo, Coutp), jnp.float32),
        grid=(N, Coutp // TCO),
        in_specs=[
            pl.BlockSpec((None, Hp, Wp, Cin), lambda n, j: (n, 0, 0, 0)),
            pl.BlockSpec((K * K, Cin, TCO), lambda n, j: (0, 0, j)),
            pl.BlockSpec((1, TCO), lambda n, j: (0, j)),
        ],
        out_specs=pl.BlockSpec((None, Ho * Wo, TCO), lambda n, j: (n, 0, j)),
        compiler_params=pltpu.CompilerParams(
            dimension_semantics=("parallel", "parallel"),
            vmem_limit_bytes=vmem_limit),
    )(x_pad, wk, b_row)

    out = out_flat[:, :, :Cout].reshape(N, Ho, Wo, Cout)
    return jnp.transpose(out, (0, 3, 1, 2)).astype(x.dtype)   # back to NCHW


# -------------------------------- module -----------------------------------

class Conv2dBlockPallas:
    """Conv2d(bias=True, kaiming-uniform weight, zero bias) + ReLU."""

    def __init__(self, in_channels, out_channels, kernel_size,
                 stride=1, padding=0, *, key, compute_dtype=jnp.bfloat16):
        self.stride = stride
        self.padding = padding
        self.compute_dtype = compute_dtype
        # kaiming_uniform_(nonlinearity='relu'), mode='fan_in':
        #   gain = sqrt(2), bound = gain * sqrt(3 / fan_in)
        fan_in = in_channels * kernel_size * kernel_size
        bound = math.sqrt(2.0) * math.sqrt(3.0 / fan_in)
        self.weight = jax.random.uniform(
            key, (out_channels, in_channels, kernel_size, kernel_size),
            dtype=jnp.float32, minval=-bound, maxval=bound)
        self.bias = jnp.zeros((out_channels,), dtype=jnp.float32)

    def __call__(self, x):
        return conv2d_block_forward(
            x, self.weight, self.bias,
            stride=self.stride, padding=self.padding,
            compute_dtype=self.compute_dtype)


# --------------------------------- main -------------------------------------

if __name__ == "__main__":
    key = jax.random.PRNGKey(0)
    k_x, k_w = jax.random.split(key)

    # Small shapes consistent with the module: N=2, Cin=4, H=W=16, K=3, pad=1
    N, Cin, H, W = 2, 4, 16, 16
    Cout, K, stride, padding = 8, 3, 1, 1

    x = jax.random.normal(k_x, (N, Cin, H, W), dtype=jnp.float32)

    block = Conv2dBlockPallas(Cin, Cout, K, stride=stride, padding=padding,
                              key=k_w)
    y = jax.block_until_ready(block(x))

    # Reference: XLA conv + bias + relu on bf16-rounded operands, matching the
    # kernel's bf16-MXU-input / f32-accumulate policy.
    xq = x.astype(jnp.bfloat16).astype(jnp.float32)
    wq = block.weight.astype(jnp.bfloat16).astype(jnp.float32)
    ref = jax.lax.conv_general_dilated(
        xq, wq, window_strides=(stride, stride),
        padding=[(padding, padding), (padding, padding)],
        dimension_numbers=("NCHW", "OIHW", "NCHW"))
    ref = jnp.maximum(ref + block.bias[None, :, None, None], 0.0)

    assert y.shape == (N, Cout, H, W), y.shape
    assert jnp.allclose(y, ref, atol=1e-2, rtol=1e-2), \
        float(jnp.max(jnp.abs(y - ref)))

    print("KERNEL_OK")
</pallas_src>

<mosaic_0001>
module attributes {stable_mosaic.version = 11 : i64} {
  func.func @_conv_bias_relu_kernel(%arg0: i32, %arg1: i32, %arg2: memref<1x18x18x4xf32, #tpu.memory_space<vmem>>, %arg3: memref<9x4x128xf32, #tpu.memory_space<vmem>>, %arg4: memref<1x128xf32, #tpu.memory_space<vmem>>, %arg5: memref<1x256x128xf32, #tpu.memory_space<vmem>>) attributes {dimension_semantics = [#tpu.dimension_semantics<parallel>, #tpu.dimension_semantics<parallel>], iteration_bounds = array<i64: 2, 1>, scalar_prefetch = 0 : i64, scratch_operands = 0 : i64, tpu.core_type = #tpu.core_type<tc>, window_params = [{transform_indices = @transform_0, window_bounds = array<i64: 1, 18, 18, 4>}, {transform_indices = @transform_1, window_bounds = array<i64: 9, 4, 128>}, {transform_indices = @transform_2, window_bounds = array<i64: 1, 128>}, {transform_indices = @transform_3, window_bounds = array<i64: 1, 256, 128>}]} {
    %cst = arith.constant 0.000000e+00 : f32
    %0 = vector.broadcast %cst : f32 to vector<256x128xf32>
    %c0 = arith.constant 0 : index
    %c0_0 = arith.constant 0 : index
    %c0_1 = arith.constant 0 : index
    %c0_2 = arith.constant 0 : index
    %1 = vector.load %arg2[%c0, %c0_0, %c0_1, %c0_2] : memref<1x18x18x4xf32, #tpu.memory_space<vmem>>, vector<1x16x16x4xf32>
    %2 = vector.shape_cast %1 : vector<1x16x16x4xf32> to vector<16x16x4xf32>
    %3 = vector.shape_cast %2 : vector<16x16x4xf32> to vector<256x4xf32>
    %4 = arith.truncf %3 : vector<256x4xf32> to vector<256x4xbf16>
    %c0_3 = arith.constant 0 : index
    %c0_4 = arith.constant 0 : index
    %c0_5 = arith.constant 0 : index
    %5 = vector.load %arg3[%c0_3, %c0_4, %c0_5] : memref<9x4x128xf32, #tpu.memory_space<vmem>>, vector<1x4x128xf32>
    %6 = vector.shape_cast %5 : vector<1x4x128xf32> to vector<4x128xf32>
    %7 = arith.truncf %6 : vector<4x128xf32> to vector<4x128xbf16>
    %cst_6 = arith.constant dense<0.000000e+00> : vector<256x128xf32>
    %8 = tpu.matmul %4, %7, %cst_6 {dimension_numbers = #tpu.dot_dimension_numbers<[1], [0], [0], [1], [0, 0, 1, 1], [], []>} : vector<256x4xbf16>, vector<4x128xbf16>, vector<256x128xf32> -> vector<256x128xf32>
    %9 = arith.addf %0, %8 : vector<256x128xf32>
    %c0_7 = arith.constant 0 : index
    %c0_8 = arith.constant 0 : index
    %c1 = arith.constant 1 : index
    %c0_9 = arith.constant 0 : index
    %10 = vector.load %arg2[%c0_7, %c0_8, %c1, %c0_9] : memref<1x18x18x4xf32, #tpu.memory_space<vmem>>, vector<1x16x16x4xf32>
    %11 = vector.shape_cast %10 : vector<1x16x16x4xf32> to vector<16x16x4xf32>
    %12 = vector.shape_cast %11 : vector<16x16x4xf32> to vector<256x4xf32>
    %13 = arith.truncf %12 : vector<256x4xf32> to vector<256x4xbf16>
    %c1_10 = arith.constant 1 : index
    %c0_11 = arith.constant 0 : index
    %c0_12 = arith.constant 0 : index
    %14 = vector.load %arg3[%c1_10, %c0_11, %c0_12] : memref<9x4x128xf32, #tpu.memory_space<vmem>>, vector<1x4x128xf32>
    %15 = vector.shape_cast %14 : vector<1x4x128xf32> to vector<4x128xf32>
    %16 = arith.truncf %15 : vector<4x128xf32> to vector<4x128xbf16>
    %cst_13 = arith.constant dense<0.000000e+00> : vector<256x128xf32>
    %17 = tpu.matmul %13, %16, %cst_13 {dimension_numbers = #tpu.dot_dimension_numbers<[1], [0], [0], [1], [0, 0, 1, 1], [], []>} : vector<256x4xbf16>, vector<4x128xbf16>, vector<256x128xf32> -> vector<256x128xf32>
    %18 = arith.addf %9, %17 : vector<256x128xf32>
    %c0_14 = arith.constant 0 : index
    %c0_15 = arith.constant 0 : index
    %c2 = arith.constant 2 : index
    %c0_16 = arith.constant 0 : index
    %19 = vector.load %arg2[%c0_14, %c0_15, %c2, %c0_16] : memref<1x18x18x4xf32, #tpu.memory_space<vmem>>, vector<1x16x16x4xf32>
    %20 = vector.shape_cast %19 : vector<1x16x16x4xf32> to vector<16x16x4xf32>
    %21 = vector.shape_cast %20 : vector<16x16x4xf32> to vector<256x4xf32>
    %22 = arith.truncf %21 : vector<256x4xf32> to vector<256x4xbf16>
    %c2_17 = arith.constant 2 : index
    %c0_18 = arith.constant 0 : index
    %c0_19 = arith.constant 0 : index
    %23 = vector.load %arg3[%c2_17, %c0_18, %c0_19] : memref<9x4x128xf32, #tpu.memory_space<vmem>>, vector<1x4x128xf32>
    %24 = vector.shape_cast %23 : vector<1x4x128xf32> to vector<4x128xf32>
    %25 = arith.truncf %24 : vector<4x128xf32> to vector<4x128xbf16>
    %cst_20 = arith.constant dense<0.000000e+00> : vector<256x128xf32>
    %26 = tpu.matmul %22, %25, %cst_20 {dimension_numbers = #tpu.dot_dimension_numbers<[1], [0], [0], [1], [0, 0, 1, 1], [], []>} : vector<256x4xbf16>, vector<4x128xbf16>, vector<256x128xf32> -> vector<256x128xf32>
    %27 = arith.addf %18, %26 : vector<256x128xf32>
    %c0_21 = arith.constant 0 : index
    %c1_22 = arith.constant 1 : index
    %c0_23 = arith.constant 0 : index
    %c0_24 = arith.constant 0 : index
    %28 = vector.load %arg2[%c0_21, %c1_22, %c0_23, %c0_24] : memref<1x18x18x4xf32, #tpu.memory_space<vmem>>, vector<1x16x16x4xf32>
    %29 = vector.shape_cast %28 : vector<1x16x16x4xf32> to vector<16x16x4xf32>
    %30 = vector.shape_cast %29 : vector<16x16x4xf32> to vector<256x4xf32>
    %31 = arith.truncf %30 : vector<256x4xf32> to vector<256x4xbf16>
    %c3 = arith.constant 3 : index
    %c0_25 = arith.constant 0 : index
    %c0_26 = arith.constant 0 : index
    %32 = vector.load %arg3[%c3, %c0_25, %c0_26] : memref<9x4x128xf32, #tpu.memory_space<vmem>>, vector<1x4x128xf32>
    %33 = vector.shape_cast %32 : vector<1x4x128xf32> to vector<4x128xf32>
    %34 = arith.truncf %33 : vector<4x128xf32> to vector<4x128xbf16>
    %cst_27 = arith.constant dense<0.000000e+00> : vector<256x128xf32>
    %35 = tpu.matmul %31, %34, %cst_27 {dimension_numbers = #tpu.dot_dimension_numbers<[1], [0], [0], [1], [0, 0, 1, 1], [], []>} : vector<256x4xbf16>, vector<4x128xbf16>, vector<256x128xf32> -> vector<256x128xf32>
    %36 = arith.addf %27, %35 : vector<256x128xf32>
    %c0_28 = arith.constant 0 : index
    %c1_29 = arith.constant 1 : index
    %c1_30 = arith.constant 1 : index
    %c0_31 = arith.constant 0 : index
    %37 = vector.load %arg2[%c0_28, %c1_29, %c1_30, %c0_31] : memref<1x18x18x4xf32, #tpu.memory_space<vmem>>, vector<1x16x16x4xf32>
    %38 = vector.shape_cast %37 : vector<1x16x16x4xf32> to vector<16x16x4xf32>
    %39 = vector.shape_cast %38 : vector<16x16x4xf32> to vector<256x4xf32>
    %40 = arith.truncf %39 : vector<256x4xf32> to vector<256x4xbf16>
    %c4 = arith.constant 4 : index
    %c0_32 = arith.constant 0 : index
    %c0_33 = arith.constant 0 : index
    %41 = vector.load %arg3[%c4, %c0_32, %c0_33] : memref<9x4x128xf32, #tpu.memory_space<vmem>>, vector<1x4x128xf32>
    %42 = vector.shape_cast %41 : vector<1x4x128xf32> to vector<4x128xf32>
    %43 = arith.truncf %42 : vector<4x128xf32> to vector<4x128xbf16>
    %cst_34 = arith.constant dense<0.000000e+00> : vector<256x128xf32>
    %44 = tpu.matmul %40, %43, %cst_34 {dimension_numbers = #tpu.dot_dimension_numbers<[1], [0], [0], [1], [0, 0, 1, 1], [], []>} : vector<256x4xbf16>, vector<4x128xbf16>, vector<256x128xf32> -> vector<256x128xf32>
    %45 = arith.addf %36, %44 : vector<256x128xf32>
    %c0_35 = arith.constant 0 : index
    %c1_36 = arith.constant 1 : index
    %c2_37 = arith.constant 2 : index
    %c0_38 = arith.constant 0 : index
    %46 = vector.load %arg2[%c0_35, %c1_36, %c2_37, %c0_38] : memref<1x18x18x4xf32, #tpu.memory_space<vmem>>, vector<1x16x16x4xf32>
    %47 = vector.shape_cast %46 : vector<1x16x16x4xf32> to vector<16x16x4xf32>
    %48 = vector.shape_cast %47 : vector<16x16x4xf32> to vector<256x4xf32>
    %49 = arith.truncf %48 : vector<256x4xf32> to vector<256x4xbf16>
    %c5 = arith.constant 5 : index
    %c0_39 = arith.constant 0 : index
    %c0_40 = arith.constant 0 : index
    %50 = vector.load %arg3[%c5, %c0_39, %c0_40] : memref<9x4x128xf32, #tpu.memory_space<vmem>>, vector<1x4x128xf32>
    %51 = vector.shape_cast %50 : vector<1x4x128xf32> to vector<4x128xf32>
    %52 = arith.truncf %51 : vector<4x128xf32> to vector<4x128xbf16>
    %cst_41 = arith.constant dense<0.000000e+00> : vector<256x128xf32>
    %53 = tpu.matmul %49, %52, %cst_41 {dimension_numbers = #tpu.dot_dimension_numbers<[1], [0], [0], [1], [0, 0, 1, 1], [], []>} : vector<256x4xbf16>, vector<4x128xbf16>, vector<256x128xf32> -> vector<256x128xf32>
    %54 = arith.addf %45, %53 : vector<256x128xf32>
    %c0_42 = arith.constant 0 : index
    %c2_43 = arith.constant 2 : index
    %c0_44 = arith.constant 0 : index
    %c0_45 = arith.constant 0 : index
    %55 = vector.load %arg2[%c0_42, %c2_43, %c0_44, %c0_45] : memref<1x18x18x4xf32, #tpu.memory_space<vmem>>, vector<1x16x16x4xf32>
    %56 = vector.shape_cast %55 : vector<1x16x16x4xf32> to vector<16x16x4xf32>
    %57 = vector.shape_cast %56 : vector<16x16x4xf32> to vector<256x4xf32>
    %58 = arith.truncf %57 : vector<256x4xf32> to vector<256x4xbf16>
    %c6 = arith.constant 6 : index
    %c0_46 = arith.constant 0 : index
    %c0_47 = arith.constant 0 : index
    %59 = vector.load %arg3[%c6, %c0_46, %c0_47] : memref<9x4x128xf32, #tpu.memory_space<vmem>>, vector<1x4x128xf32>
    %60 = vector.shape_cast %59 : vector<1x4x128xf32> to vector<4x128xf32>
    %61 = arith.truncf %60 : vector<4x128xf32> to vector<4x128xbf16>
    %cst_48 = arith.constant dense<0.000000e+00> : vector<256x128xf32>
    %62 = tpu.matmul %58, %61, %cst_48 {dimension_numbers = #tpu.dot_dimension_numbers<[1], [0], [0], [1], [0, 0, 1, 1], [], []>} : vector<256x4xbf16>, vector<4x128xbf16>, vector<256x128xf32> -> vector<256x128xf32>
    %63 = arith.addf %54, %62 : vector<256x128xf32>
    %c0_49 = arith.constant 0 : index
    %c2_50 = arith.constant 2 : index
    %c1_51 = arith.constant 1 : index
    %c0_52 = arith.constant 0 : index
    %64 = vector.load %arg2[%c0_49, %c2_50, %c1_51, %c0_52] : memref<1x18x18x4xf32, #tpu.memory_space<vmem>>, vector<1x16x16x4xf32>
    %65 = vector.shape_cast %64 : vector<1x16x16x4xf32> to vector<16x16x4xf32>
    %66 = vector.shape_cast %65 : vector<16x16x4xf32> to vector<256x4xf32>
    %67 = arith.truncf %66 : vector<256x4xf32> to vector<256x4xbf16>
    %c7 = arith.constant 7 : index
    %c0_53 = arith.constant 0 : index
    %c0_54 = arith.constant 0 : index
    %68 = vector.load %arg3[%c7, %c0_53, %c0_54] : memref<9x4x128xf32, #tpu.memory_space<vmem>>, vector<1x4x128xf32>
    %69 = vector.shape_cast %68 : vector<1x4x128xf32> to vector<4x128xf32>
    %70 = arith.truncf %69 : vector<4x128xf32> to vector<4x128xbf16>
    %cst_55 = arith.constant dense<0.000000e+00> : vector<256x128xf32>
    %71 = tpu.matmul %67, %70, %cst_55 {dimension_numbers = #tpu.dot_dimension_numbers<[1], [0], [0], [1], [0, 0, 1, 1], [], []>} : vector<256x4xbf16>, vector<4x128xbf16>, vector<256x128xf32> -> vector<256x128xf32>
    %72 = arith.addf %63, %71 : vector<256x128xf32>
    %c0_56 = arith.constant 0 : index
    %c2_57 = arith.constant 2 : index
    %c2_58 = arith.constant 2 : index
    %c0_59 = arith.constant 0 : index
    %73 = vector.load %arg2[%c0_56, %c2_57, %c2_58, %c0_59] : memref<1x18x18x4xf32, #tpu.memory_space<vmem>>, vector<1x16x16x4xf32>
    %74 = vector.shape_cast %73 : vector<1x16x16x4xf32> to vector<16x16x4xf32>
    %75 = vector.shape_cast %74 : vector<16x16x4xf32> to vector<256x4xf32>
    %76 = arith.truncf %75 : vector<256x4xf32> to vector<256x4xbf16>
    %c8 = arith.constant 8 : index
    %c0_60 = arith.constant 0 : index
    %c0_61 = arith.constant 0 : index
    %77 = vector.load %arg3[%c8, %c0_60, %c0_61] : memref<9x4x128xf32, #tpu.memory_space<vmem>>, vector<1x4x128xf32>
    %78 = vector.shape_cast %77 : vector<1x4x128xf32> to vector<4x128xf32>
    %79 = arith.truncf %78 : vector<4x128xf32> to vector<4x128xbf16>
    %cst_62 = arith.constant dense<0.000000e+00> : vector<256x128xf32>
    %80 = tpu.matmul %76, %79, %cst_62 {dimension_numbers = #tpu.dot_dimension_numbers<[1], [0], [0], [1], [0, 0, 1, 1], [], []>} : vector<256x4xbf16>, vector<4x128xbf16>, vector<256x128xf32> -> vector<256x128xf32>
    %81 = arith.addf %72, %80 : vector<256x128xf32>
    %c0_63 = arith.constant 0 : index
    %c0_64 = arith.constant 0 : index
    %82 = vector.load %arg4[%c0_63, %c0_64] : memref<1x128xf32, #tpu.memory_space<vmem>>, vector<1x128xf32>
    %83 = vector.broadcast %82 : vector<1x128xf32> to vector<256x128xf32>
    %84 = arith.addf %81, %83 : vector<256x128xf32>
    %cst_65 = arith.constant 0.000000e+00 : f32
    %85 = vector.broadcast %cst_65 : f32 to vector<256x128xf32>
    %86 = arith.maximumf %84, %85 : vector<256x128xf32>
    %c0_66 = arith.constant 0 : index
    %c0_67 = arith.constant 0 : index
    %c0_68 = arith.constant 0 : index
    %87 = vector.load %arg5[%c0_66, %c0_67, %c0_68] : memref<1x256x128xf32, #tpu.memory_space<vmem>>, vector<1x256x128xf32>
    %88 = vector.shape_cast %87 : vector<1x256x128xf32> to vector<256x128xf32>
    %89 = vector.shape_cast %86 : vector<256x128xf32> to vector<1x256x128xf32>
    tpu.vector_store %arg5[%c0_66, %c0_67, %c0_68], %89 {strides = array<i32>} : memref<1x256x128xf32, #tpu.memory_space<vmem>>, vector<1x256x128xf32>,
    return
  }
  func.func @transform_0(%arg0: i32, %arg1: i32) -> (i32, i32, i32, i32) {
    %c0_i32 = arith.constant 0 : i32
    %c0_i32_0 = arith.constant 0 : i32
    %c0_i32_1 = arith.constant 0 : i32
    %c0_i32_2 = arith.constant 0 : i32
    return %arg0, %c0_i32, %c0_i32_0, %c0_i32_1 : i32, i32, i32, i32
  }
  func.func @transform_1(%arg0: i32, %arg1: i32) -> (i32, i32, i32) {
    %c0_i32 = arith.constant 0 : i32
    %c0_i32_0 = arith.constant 0 : i32
    %c0_i32_1 = arith.constant 0 : i32
    return %c0_i32, %c0_i32_0, %arg1 : i32, i32, i32
  }
  func.func @transform_2(%arg0: i32, %arg1: i32) -> (i32, i32) {
    %c0_i32 = arith.constant 0 : i32
    %c0_i32_0 = arith.constant 0 : i32
    return %c0_i32, %arg1 : i32, i32
  }
  func.func @transform_3(%arg0: i32, %arg1: i32) -> (i32, i32, i32) {
    %c0_i32 = arith.constant 0 : i32
    %c0_i32_0 = arith.constant 0 : i32
    return %arg0, %c0_i32, %arg1 : i32, i32, i32
  }
}

</mosaic_0001>

<llo_original>
// kernel: conv2d_block_forward.1
$region0: #{conv2d_block_forward.1}
  #allocation0 [shape = 'u32[]', space=smem, size = 0x4, offset = 0x4, fixed_abs, tag = 'smem constant byte address 0x4 - core index']
  #allocation1 [shape = 'u32[144,128]{1,0:T(1,128)}', space=vmem, size = 0x12000, scoped, tag = 'internal scratch']
  %s0 = inlined_call_operand.vmem [shape: f32[2,18,18,4], index: 0, kind: input, shape index: {}]
  %s1 = inlined_call_operand.vmem [shape: f32[9,4,128], index: 1, kind: input, shape index: {}]
  %s2 = inlined_call_operand.vmem [shape: f32[1,128], index: 2, kind: input, shape index: {}]
  %s3 = inlined_call_operand.vmem [shape: f32[2,256,128], index: 3, kind: output, shape index: {}]
  %s4 = sld [smem:[#allocation0]]
  $region45: #{conv2d_block_forward.1} parent=0
    _
  %s6 = ssub.s32 1, %s4
  %s7 = scalar_select 0, %s6, %s4
  loop: start=0, step=1, limit=4
  $region2: #{conv2d_block_forward.1} parent=0 // loop_pre_header
    _
  $region3: #{conv2d_block_forward.1} parent=0 // loop_header
    %s9 = sphi 0, %s13
    %p10 = scmp.ge.s32.totalorder %s9, 4
    %s16 = sphi 0, %s28
    %s17 = sphi 0, %s24
    %s18 = sphi 0, %s16
    %s19 = sphi 0, %s17
    %s20 = sphi 0, %s18
    %s21 = sphi 0, %s19
    %s31 = sphi 0, %s33
    %s34 = sphi 0, %s31
    %s35 = sphi 0, %s34
    %s51 = sphi 0, %s35
    %s57 = sphi 0, %s59
    %s60 = sphi 0, %s57
    %s61 = sphi 0, %s60
    %s77 = sphi 0, %s61
    %s83 = sphi 0, %s85
    %s86 = sphi 0, %s83
    %s87 = sphi 0, %s86
    %s103 = sphi 0, %s87
    %s111 = sphi 0, %s113
    %s114 = sphi 0, %s111
    %s115 = sphi 0, %s114
    %s131 = sphi 0, %s115
  $region4: #{conv2d_block_forward.1} parent=0 // loop_header_branch
    %12 = sbr.rel (%p10) target = $region8
  $region5: #{conv2d_block_forward.1} parent=0 // loop_body
    %s14 = ssub.s32 %s9, 1
    %s15 = ssub.s32 %s9, 2
    %s22 = sadd.s32 1, %s17
    %p23 = scmp.ge.s32.totalorder %s22, 1
    %s24 = scalar_select %p23, 0, %s22
    %s25 = sadd.s32 1, %s16
    %s26 = scalar_select %p23, %s25, %s16
    %p27 = scmp.ge.s32.totalorder %s26, 2
    %s28 = scalar_select %p27, 0, %s26
    %s29 = ssub.s32 %s16, %s28
    %p30 = scmp.eq.s32.totalorder %s29, 0
    %s32 = sadd.s32 %s31, 1
    %s33 = scalar_select %p30, %s31, %s32
    %p36 = pneg %p30
    %p37 = scmp.eq.s32.totalorder %s9, 1
    %p38 = por %p36, %p37
    %p39 = scmp.ne.s32.totalorder %s31, %s34
    %p40 = scmp.eq.s32.totalorder %s9, 0
    %p41 = por %p39, %p40
    %p42 = scmp.ne.s32.totalorder %s31, %s34
    %p43 = scmp.eq.s32.totalorder %s14, 1
    %p44 = por %p42, %p43
    %p45 = scmp.ne.s32.totalorder %s34, %s35
    %p46 = scmp.eq.s32.totalorder %s14, 0
    %p47 = por %p45, %p46
    %p48 = scmp.ne.s32.totalorder %s34, %s35
    %p49 = scmp.eq.s32.totalorder %s15, 1
    %p50 = por %p48, %p49
    %p52 = scmp.ne.s32.totalorder %s35, %s51
    %p53 = scmp.eq.s32.totalorder %s15, 0
    %p54 = por %p52, %p53
    %s55 = ssub.s32 %s17, %s24
    %p56 = scmp.eq.s32.totalorder %s55, 0
    %s58 = sadd.s32 %s57, 1
    %s59 = scalar_select %p56, %s57, %s58
    %p62 = pneg %p56
    %p63 = scmp.eq.s32.totalorder %s9, 1
    %p64 = por %p62, %p63
    %p65 = scmp.ne.s32.totalorder %s57, %s60
    %p66 = scmp.eq.s32.totalorder %s9, 0
    %p67 = por %p65, %p66
    %p68 = scmp.ne.s32.totalorder %s57, %s60
    %p69 = scmp.eq.s32.totalorder %s14, 1
    %p70 = por %p68, %p69
    %p71 = scmp.ne.s32.totalorder %s60, %s61
    %p72 = scmp.eq.s32.totalorder %s14, 0
    %p73 = por %p71, %p72
    %p74 = scmp.ne.s32.totalorder %s60, %s61
    %p75 = scmp.eq.s32.totalorder %s15, 1
    %p76 = por %p74, %p75
    %p78 = scmp.ne.s32.totalorder %s61, %s77
    %p79 = scmp.eq.s32.totalorder %s15, 0
    %p80 = por %p78, %p79
    %s81 = ssub.s32 %s17, %s24
    %p82 = scmp.eq.s32.totalorder %s81, 0
    %s84 = sadd.s32 %s83, 1
    %s85 = scalar_select %p82, %s83, %s84
    %p88 = pneg %p82
    %p89 = scmp.eq.s32.totalorder %s9, 1
    %p90 = por %p88, %p89
    %p91 = scmp.ne.s32.totalorder %s83, %s86
    %p92 = scmp.eq.s32.totalorder %s9, 0
    %p93 = por %p91, %p92
    %p94 = scmp.ne.s32.totalorder %s83, %s86
    %p95 = scmp.eq.s32.totalorder %s14, 1
    %p96 = por %p94, %p95
    %p97 = scmp.ne.s32.totalorder %s86, %s87
    %p98 = scmp.eq.s32.totalorder %s14, 0
    %p99 = por %p97, %p98
    %p100 = scmp.ne.s32.totalorder %s86, %s87
    %p101 = scmp.eq.s32.totalorder %s15, 1
    %p102 = por %p100, %p101
    %p104 = scmp.ne.s32.totalorder %s87, %s103
    %p105 = scmp.eq.s32.totalorder %s15, 0
    %p106 = por %p104, %p105
    %s107 = ssub.s32 %s16, %s28
    %s108 = ssub.s32 %s17, %s24
    %s109 = sor.u32 %s107, %s108
    %p110 = scmp.eq.s32.totalorder %s109, 0
    %s112 = sadd.s32 %s111, 1
    %s113 = scalar_select %p110, %s111, %s112
    %p116 = pneg %p110
    %p117 = scmp.eq.s32.totalorder %s9, 1
    %p118 = por %p116, %p117
    %p119 = scmp.ne.s32.totalorder %s111, %s114
    %p120 = scmp.eq.s32.totalorder %s9, 0
    %p121 = por %p119, %p120
    %p122 = scmp.ne.s32.totalorder %s111, %s114
    %p123 = scmp.eq.s32.totalorder %s14, 1
    %p124 = por %p122, %p123
    %p125 = scmp.ne.s32.totalorder %s114, %s115
    %p126 = scmp.eq.s32.totalorder %s14, 0
    %p127 = por %p125, %p126
    %p128 = scmp.ne.s32.totalorder %s114, %s115
    %p129 = scmp.eq.s32.totalorder %s15, 1
    %p130 = por %p128, %p129
    %p132 = scmp.ne.s32.totalorder %s115, %s131
    %p133 = scmp.eq.s32.totalorder %s15, 0
    %p134 = por %p132, %p133
    %p135 = scmp.le.s32.totalorder 1, %s9
    %p136 = scmp.lt.s32.totalorder %s9, 3
    %p137 = pnand %p135, %p136
    %p138 = pneg %p137
    // Predicated region
    $region9: #{conv2d_block_forward.1} parent=5 // pred_check
      _
    $region10: #{conv2d_block_forward.1} parent=5 // pred_check_branch
      %140 = sbr.rel (%p137) target = $region12
    $region11: #{conv2d_block_forward.1} parent=5 // pred_region
      %s141 = ssub.s32 %s9, 1
      // Predicated region
      $region13: #{conv2d_block_forward.1} parent=11 // pred_check
        %p142 = pneg %p73
      $region14: #{conv2d_block_forward.1} parent=11 // pred_check_branch
        %144 = sbr.rel (%p142) target = $region16
      $region15: #{conv2d_block_forward.1} parent=11 // pred_region
        %p145 = scmp.lt.s32.totalorder %s19, 0
        %s146 = scalar_select %p145, %s19, 0
        %s147 = smul.addr %s146, 4
        %s148 = scalar_lea.vmem %s1, %s147
      $region16: #{conv2d_block_forward.1} parent=11 // pred_fallthru
        _
      // Predicated region
      $region17: #{conv2d_block_forward.1} parent=11 // pred_check
        %p149 = pneg %p99
      $region18: #{conv2d_block_forward.1} parent=11 // pred_check_branch
        %151 = sbr.rel (%p149) target = $region20
      $region19: #{conv2d_block_forward.1} parent=11 // pred_region
        %p152 = scmp.lt.s32.totalorder %s19, 0
        %s153 = scalar_select %p152, %s19, 0
        %s154 = scalar_lea.vmem %s2, %s153
      $region20: #{conv2d_block_forward.1} parent=11 // pred_fallthru
        _
    $region12: #{conv2d_block_forward.1} parent=5 // pred_fallthru
      _
    %p155 = scmp.lt.s32.totalorder %s9, 2
    // Predicated region
    $region21: #{conv2d_block_forward.1} parent=5 // pred_check
      %p156 = pneg %p155
    $region22: #{conv2d_block_forward.1} parent=5 // pred_check_branch
      %158 = sbr.rel (%p156) target = $region24
    $region23: #{conv2d_block_forward.1} parent=5 // pred_region
      // Predicated region
      $region25: #{conv2d_block_forward.1} parent=23 // pred_check
        %p159 = pneg %p41
      $region26: #{conv2d_block_forward.1} parent=23 // pred_check_branch
        %161 = sbr.rel (%p159) target = $region28
      $region27: #{conv2d_block_forward.1} parent=23 // pred_region
        %p162 = scmp.lt.s32.totalorder %s16, 1
        %s163 = scalar_select %p162, %s16, 1
        %s164 = smul.addr %s163, 54
        %s165 = smul.addr %s164, 8
        %s166 = scalar_lea.vmem %s0, %s165
      $region28: #{conv2d_block_forward.1} parent=23 // pred_fallthru
        _
    $region24: #{conv2d_block_forward.1} parent=5 // pred_fallthru
      _
    %p167 = scmp.le.s32.totalorder 1, %s9
    %p168 = scmp.lt.s32.totalorder %s9, 3
    %p169 = pnand %p167, %p168
    %p170 = pneg %p169
    // Predicated region
    $region29: #{conv2d_block_forward.1} parent=5 // pred_check
      _
    $region30: #{conv2d_block_forward.1} parent=5 // pred_check_branch
      %172 = sbr.rel (%p169) target = $region32
    $region31: #{conv2d_block_forward.1} parent=5 // pred_region
      %s173 = ssub.s32 %s9, 1
      %p174 = scmp.lt.s32.totalorder %s18, 1
      %s175 = scalar_select %p174, %s18, 1
      %s176 = smul.addr %s175, 54
      %s177 = smul.addr %s176, 8
      %s178 = scalar_lea.vmem %s0, %s177
      %p179 = pneg %p47
      %p180 = pneg %p44
      %p181 = scmp.lt.s32.totalorder %s19, 0
      %s182 = scalar_select %p181, %s19, 0
      %s183 = smul.addr %s182, 4
      %s184 = scalar_lea.vmem %s1, %s183
      %p185 = pneg %p73
      %p186 = pneg %p70
      %p187 = scmp.lt.s32.totalorder %s19, 0
      %s188 = scalar_select %p187, %s19, 0
      %s189 = scalar_lea.vmem %s2, %s188
      %p190 = pneg %p99
      %p191 = pneg %p96
      %p192 = pneg %p127
      %p193 = pneg %p124
      %p194 = scmp.lt.s32.totalorder %s18, 1
      %s195 = scalar_select %p194, %s18, 1
      %p196 = scmp.lt.s32.totalorder %s19, 0
      %s197 = scalar_select %p196, %s19, 0
      %s198 = smul.addr %s195, 32
      %s199 = sadd.s32 %s197, %s198
      %s200 = smul.addr %s199, 8
      %s201 = scalar_lea.vmem %s3, %s200
      %p202 = scmp.lt.s32.totalorder %s18, 1
      %s203 = scalar_select %p202, %s18, 1
      %s204 = smul.addr %s203, 54
      %s205 = smul.addr %s204, 8
      %s206 = scalar_lea.vmem %s0, %s205
      %p207 = scmp.lt.s32.totalorder %s19, 0
      %s208 = scalar_select %p207, %s19, 0
      %s209 = smul.addr %s208, 4
      %s210 = scalar_lea.vmem %s1, %s209
      %p211 = scmp.lt.s32.totalorder %s19, 0
      %s212 = scalar_select %p211, %s19, 0
      %s213 = scalar_lea.vmem %s2, %s212
      %p214 = scmp.lt.s32.totalorder %s18, 1
      %s215 = scalar_select %p214, %s18, 1
      %p216 = scmp.lt.s32.totalorder %s19, 0
      %s217 = scalar_select %p216, %s19, 0
      %s218 = smul.addr %s215, 32
      %s219 = sadd.s32 %s217, %s218
      %s220 = smul.addr %s219, 8
      %s221 = scalar_lea.vmem %s3, %s220
      %v223 = vld [vmem:[%s206] sm:$0xff]
      %v224 = vld [vmem:[%s206 + $0x8] sm:$0xff]
      %v225 = vld [vmem:[%s206 + $0x18] sm:$0xff]
      %v226 = vld [vmem:[%s206 + $0x20] sm:$0xff]
      %v227 = vld [vmem:[%s206 + $0x30] sm:$0xff]
      %v228 = vld [vmem:[%s206 + $0x38] sm:$0xff]
      %v229 = vld [vmem:[%s206 + $0x48] sm:$0xff]
      %v230 = vld [vmem:[%s206 + $0x50] sm:$0xff]
      %v231 = vld [vmem:[%s206 + $0x60] sm:$0xff]
      %v232 = vld [vmem:[%s206 + $0x68] sm:$0xff]
      %v233 = vld [vmem:[%s206 + $0x78] sm:$0xff]
      %v234 = vld [vmem:[%s206 + $0x80] sm:$0xff]
      %v235 = vld [vmem:[%s206 + $0x90] sm:$0xff]
      %v236 = vld [vmem:[%s206 + $0x98] sm:$0xff]
      %v237 = vld [vmem:[%s206 + $0xa8] sm:$0xff]
      %v238 = vld [vmem:[%s206 + $0xb0] sm:$0xff]
      %v239 = vld [vmem:[%s206 + $0xc0] sm:$0xff]
      %v240 = vld [vmem:[%s206 + $0xc8] sm:$0xff]
      %v241 = vld [vmem:[%s206 + $0xd8] sm:$0xff]
      %v242 = vld [vmem:[%s206 + $0xe0] sm:$0xff]
      %v243 = vld [vmem:[%s206 + $0xf0] sm:$0xff]
      %v244 = vld [vmem:[%s206 + $0xf8] sm:$0xff]
      %v245 = vld [vmem:[%s206 + $0x108] sm:$0xff]
      %v246 = vld [vmem:[%s206 + $0x110] sm:$0xff]
      %v247 = vld [vmem:[%s206 + $0x120] sm:$0xff]
      %v248 = vld [vmem:[%s206 + $0x128] sm:$0xff]
      %v249 = vld [vmem:[%s206 + $0x138] sm:$0xff]
      %v250 = vld [vmem:[%s206 + $0x140] sm:$0xff]
      %v251 = vld [vmem:[%s206 + $0x150] sm:$0xff]
      %v252 = vld [vmem:[%s206 + $0x158] sm:$0xff]
      %v253 = vld [vmem:[%s206 + $0x168] sm:$0xff]
      %v254 = vld [vmem:[%s206 + $0x170] sm:$0xff]
      %v255 = vpack.c.bf16 %v224, %v223
      %v256 = vpack.c.bf16 %v226, %v225
      %v257 = vpack.c.bf16 %v228, %v227
      %v258 = vpack.c.bf16 %v230, %v229
      %v259 = vpack.c.bf16 %v232, %v231
      %v260 = vpack.c.bf16 %v234, %v233
      %v261 = vpack.c.bf16 %v236, %v235
      %v262 = vpack.c.bf16 %v238, %v237
      %v263 = vpack.c.bf16 %v240, %v239
      %v264 = vpack.c.bf16 %v242, %v241
      %v265 = vpack.c.bf16 %v244, %v243
      %v266 = vpack.c.bf16 %v246, %v245
      %v267 = vpack.c.bf16 %v248, %v247
      %v268 = vpack.c.bf16 %v250, %v249
      %v269 = vpack.c.bf16 %v252, %v251
      %v270 = vpack.c.bf16 %v254, %v253
      %v271 = vld [vmem:[%s210] sm:$0xf]
      %v272 = vpack.c.bf16 %v271, %v271
      %v273 = vld [vmem:[%s206 + $0x1] sm:$0xff]
      %v274 = vld [vmem:[%s206 + $0x9] sm:$0xff]
      %v275 = vld [vmem:[%s206 + $0x19] sm:$0xff]
      %v276 = vld [vmem:[%s206 + $0x21] sm:$0xff]
      %v277 = vld [vmem:[%s206 + $0x31] sm:$0xff]
      %v278 = vld [vmem:[%s206 + $0x39] sm:$0xff]
      %v279 = vld [vmem:[%s206 + $0x49] sm:$0xff]
      %v280 = vld [vmem:[%s206 + $0x51] sm:$0xff]
      %v281 = vld [vmem:[%s206 + $0x61] sm:$0xff]
      %v282 = vld [vmem:[%s206 + $0x69] sm:$0xff]
      %v283 = vld [vmem:[%s206 + $0x79] sm:$0xff]
      %v284 = vld [vmem:[%s206 + $0x81] sm:$0xff]
      %v285 = vld [vmem:[%s206 + $0x91] sm:$0xff]
      %v286 = vld [vmem:[%s206 + $0x99] sm:$0xff]
      %v287 = vld [vmem:[%s206 + $0xa9] sm:$0xff]
      %v288 = vld [vmem:[%s206 + $0xb1] sm:$0xff]
      %v289 = vld [vmem:[%s206 + $0xc1] sm:$0xff]
      %v290 = vld [vmem:[%s206 + $0xc9] sm:$0xff]
      %v291 = vld [vmem:[%s206 + $0xd9] sm:$0xff]
      %v292 = vld [vmem:[%s206 + $0xe1] sm:$0xff]
      %v293 = vld [vmem:[%s206 + $0xf1] sm:$0xff]
      %v294 = vld [vmem:[%s206 + $0xf9] sm:$0xff]
      %v295 = vld [vmem:[%s206 + $0x109] sm:$0xff]
      %v296 = vld [vmem:[%s206 + $0x111] sm:$0xff]
      %v297 = vld [vmem:[%s206 + $0x121] sm:$0xff]
      %v298 = vld [vmem:[%s206 + $0x129] sm:$0xff]
      %v299 = vld [vmem:[%s206 + $0x139] sm:$0xff]
      %v300 = vld [vmem:[%s206 + $0x141] sm:$0xff]
      %v301 = vld [vmem:[%s206 + $0x151] sm:$0xff]
      %v302 = vld [vmem:[%s206 + $0x159] sm:$0xff]
      %v303 = vld [vmem:[%s206 + $0x169] sm:$0xff]
      %v304 = vld [vmem:[%s206 + $0x171] sm:$0xff]
      %v305 = vpack.c.bf16 %v274, %v273
      %v306 = vpack.c.bf16 %v276, %v275
      %v307 = vpack.c.bf16 %v278, %v277
      %v308 = vpack.c.bf16 %v280, %v279
      %v309 = vpack.c.bf16 %v282, %v281
      %v310 = vpack.c.bf16 %v284, %v283
      %v311 = vpack.c.bf16 %v286, %v285
      %v312 = vpack.c.bf16 %v288, %v287
      %v313 = vpack.c.bf16 %v290, %v289
      %v314 = vpack.c.bf16 %v292, %v291
      %v315 = vpack.c.bf16 %v294, %v293
      %v316 = vpack.c.bf16 %v296, %v295
      %v317 = vpack.c.bf16 %v298, %v297
      %v318 = vpack.c.bf16 %v300, %v299
      %v319 = vpack.c.bf16 %v302, %v301
      %v320 = vpack.c.bf16 %v304, %v303
      %s321 = scalar_lea.vmem %s210, 4
      %v322 = vld [vmem:[%s321] sm:$0xf]
      %v323 = vpack.c.bf16 %v322, %v322
      %vm324 = vcmask 31744
      %v326 = vsel %vm324, %v305, 0
      %v329 = vsel %vm324, %v306, 0
      %v332 = vsel %vm324, %v307, 0
      %v335 = vsel %vm324, %v308, 0
      %v338 = vsel %vm324, %v309, 0
      %v341 = vsel %vm324, %v310, 0
      %v344 = vsel %vm324, %v311, 0
      %v347 = vsel %vm324, %v312, 0
      %v350 = vsel %vm324, %v313, 0
      %v353 = vsel %vm324, %v314, 0
      %v356 = vsel %vm324, %v315, 0
      %v359 = vsel %vm324, %v316, 0
      %v362 = vsel %vm324, %v317, 0
      %v365 = vsel %vm324, %v318, 0
      %v368 = vsel %vm324, %v319, 0
      %v371 = vsel %vm324, %v320, 0
      %vm373 = vcmask 1041408
      %v375 = vsel %vm373, %v323, 0
      %377 = vmatprep.subr.bf16.mxu0 0
      %378 = vmatpush1.bf16.msra.mxu0 %v375
      %379 = vmatprep.subr.bf16.mxu0 0
      %380 = vmatpush1.bf16.msra.mxu0 0
      %381 = vmatprep.subr.bf16.mxu0 0
      %382 = vmatpush1.bf16.msra.mxu0 0
      %383 = vmatprep.subr.bf16.mxu0 0
      %384 = vmatpush1.bf16.msra.mxu0 0
      %385 = vmatprep.subr.bf16.mxu0 0
      %386 = vmatpush1.bf16.msra.mxu0 0
      %387 = vmatprep.subr.bf16.mxu0 0
      %388 = vmatpush1.bf16.msra.mxu0 0
      %389 = vmatprep.subr.bf16.mxu0 0
      %390 = vmatpush1.bf16.msra.mxu0 0
      %391 = vmatprep.subr.bf16.mxu0 0
      %392 = vmatpush1.bf16.msra.mxu0 0
      %393 = vmatprep.subr.bf16.mxu0 0
      %394 = vmatpush1.bf16.msra.mxu0 0
      %395 = vmatprep.subr.bf16.mxu0 0
      %396 = vmatpush1.bf16.msra.mxu0 0
      %397 = vmatprep.subr.bf16.mxu0 0
      %398 = vmatpush1.bf16.msra.mxu0 0
      %399 = vmatprep.subr.bf16.mxu0 0
      %400 = vmatpush1.bf16.msra.mxu0 0
      %401 = vmatprep.subr.bf16.mxu0 0
      %402 = vmatpush1.bf16.msra.mxu0 0
      %403 = vmatprep.subr.bf16.mxu0 0
      %404 = vmatpush1.bf16.msra.mxu0 0
      %405 = vmatprep.subr.bf16.mxu0 0
      %406 = vmatpush1.bf16.msra.mxu0 0
      %407 = vmatprep.subr.bf16.mxu0 0
      %408 = vmatpush1.bf16.msra.mxu0 0
      %409 = vmatprep.mubr.bf16.mxu0 0
      %410 = vmatmul.mubr.bf16.gmra.mrb[0].mxu0 %v326
      %v411 = vpop.f32.mrb[0].mxu0
      %v412 = vadd.f32 0.0, %v411
      %v413 = vpop.f32.mrb[0].mxu0
      %v414 = vpop.f32.mrb[0].mxu0
      %v415 = vadd.f32 0.0, %v414
      %v416 = vpop.f32.mrb[0].mxu0
      %417 = vmatprep.mubr.bf16.mxu0 0
      %418 = vmatmul.mubr.bf16.gmra.mrb[0].mxu0 %v329
      %v419 = vpop.f32.mrb[0].mxu0
      %v420 = vadd.f32 0.0, %v419
      %v421 = vpop.f32.mrb[0].mxu0
      %v422 = vpop.f32.mrb[0].mxu0
      %v423 = vadd.f32 0.0, %v422
      %v424 = vpop.f32.mrb[0].mxu0
      %425 = vmatprep.mubr.bf16.mxu0 0
      %426 = vmatmul.mubr.bf16.gmra.mrb[0].mxu0 %v332
      %v427 = vpop.f32.mrb[0].mxu0
      %v428 = vadd.f32 0.0, %v427
      %v429 = vpop.f32.mrb[0].mxu0
      %v430 = vpop.f32.mrb[0].mxu0
      %v431 = vadd.f32 0.0, %v430
      %v432 = vpop.f32.mrb[0].mxu0
      %433 = vmatprep.mubr.bf16.mxu0 0
      %434 = vmatmul.mubr.bf16.gmra.mrb[0].mxu0 %v335
      %v435 = vpop.f32.mrb[0].mxu0
      %v436 = vadd.f32 0.0, %v435
      %v437 = vpop.f32.mrb[0].mxu0
      %v438 = vpop.f32.mrb[0].mxu0
      %v439 = vadd.f32 0.0, %v438
      %v440 = vpop.f32.mrb[0].mxu0
      %441 = vmatprep.mubr.bf16.mxu0 0
      %442 = vmatmul.mubr.bf16.gmra.mrb[0].mxu0 %v338
      %v443 = vpop.f32.mrb[0].mxu0
      %v444 = vadd.f32 0.0, %v443
      %v445 = vpop.f32.mrb[0].mxu0
      %v446 = vpop.f32.mrb[0].mxu0
      %v447 = vadd.f32 0.0, %v446
      %v448 = vpop.f32.mrb[0].mxu0
      %449 = vmatprep.mubr.bf16.mxu0 0
      %450 = vmatmul.mubr.bf16.gmra.mrb[0].mxu0 %v341
      %v451 = vpop.f32.mrb[0].mxu0
      %v452 = vadd.f32 0.0, %v451
      %v453 = vpop.f32.mrb[0].mxu0
      %v454 = vpop.f32.mrb[0].mxu0
      %v455 = vadd.f32 0.0, %v454
      %v456 = vpop.f32.mrb[0].mxu0
      %457 = vmatprep.mubr.bf16.mxu0 0
      %458 = vmatmul.mubr.bf16.gmra.mrb[0].mxu0 %v344
      %v459 = vpop.f32.mrb[0].mxu0
      %v460 = vadd.f32 0.0, %v459
      %v461 = vpop.f32.mrb[0].mxu0
      %v462 = vpop.f32.mrb[0].mxu0
      %v463 = vadd.f32 0.0, %v462
      %v464 = vpop.f32.mrb[0].mxu0
      %465 = vmatprep.mubr.bf16.mxu0 0
      %466 = vmatmul.mubr.bf16.gmra.mrb[0].mxu0 %v347
      %v467 = vpop.f32.mrb[0].mxu0
      %v468 = vadd.f32 0.0, %v467
      %v469 = vpop.f32.mrb[0].mxu0
      %v470 = vpop.f32.mrb[0].mxu0
      %v471 = vadd.f32 0.0, %v470
      %v472 = vpop.f32.mrb[0].mxu0
      %473 = vmatprep.mubr.bf16.mxu0 0
      %474 = vmatmul.mubr.bf16.gmra.mrb[0].mxu0 %v350
      %v475 = vpop.f32.mrb[0].mxu0
      %v476 = vadd.f32 0.0, %v475
      %v477 = vpop.f32.mrb[0].mxu0
      %v478 = vpop.f32.mrb[0].mxu0
      %v479 = vadd.f32 0.0, %v478
      %v480 = vpop.f32.mrb[0].mxu0
      %481 = vmatprep.mubr.bf16.mxu0 0
      %482 = vmatmul.mubr.bf16.gmra.mrb[0].mxu0 %v353
      %v483 = vpop.f32.mrb[0].mxu0
      %v484 = vadd.f32 0.0, %v483
      %v485 = vpop.f32.mrb[0].mxu0
      %v486 = vpop.f32.mrb[0].mxu0
      %v487 = vadd.f32 0.0, %v486
      %v488 = vpop.f32.mrb[0].mxu0
      %489 = vmatprep.mubr.bf16.mxu0 0
      %490 = vmatmul.mubr.bf16.gmra.mrb[0].mxu0 %v356
      %v491 = vpop.f32.mrb[0].mxu0
      %v492 = vadd.f32 0.0, %v491
      %v493 = vpop.f32.mrb[0].mxu0
      %v494 = vpop.f32.mrb[0].mxu0
      %v495 = vadd.f32 0.0, %v494
      %v496 = vpop.f32.mrb[0].mxu0
      %497 = vmatprep.mubr.bf16.mxu0 0
      %498 = vmatmul.mubr.bf16.gmra.mrb[0].mxu0 %v359
      %v499 = vpop.f32.mrb[0].mxu0
      %v500 = vadd.f32 0.0, %v499
      %v501 = vpop.f32.mrb[0].mxu0
      %v502 = vpop.f32.mrb[0].mxu0
      %v503 = vadd.f32 0.0, %v502
      %v504 = vpop.f32.mrb[0].mxu0
      %505 = vmatprep.mubr.bf16.mxu0 0
      %506 = vmatmul.mubr.bf16.gmra.mrb[0].mxu0 %v362
      %v507 = vpop.f32.mrb[0].mxu0
      %v508 = vadd.f32 0.0, %v507
      %v509 = vpop.f32.mrb[0].mxu0
      %v510 = vpop.f32.mrb[0].mxu0
      %v511 = vadd.f32 0.0, %v510
      %v512 = vpop.f32.mrb[0].mxu0
      %513 = vmatprep.mubr.bf16.mxu0 0
      %514 = vmatmul.mubr.bf16.gmra.mrb[0].mxu0 %v365
      %v515 = vpop.f32.mrb[0].mxu0
      %v516 = vadd.f32 0.0, %v515
      %v517 = vpop.f32.mrb[0].mxu0
      %v518 = vpop.f32.mrb[0].mxu0
      %v519 = vadd.f32 0.0, %v518
      %v520 = vpop.f32.mrb[0].mxu0
      %521 = vmatprep.mubr.bf16.mxu0 0
      %522 = vmatmul.mubr.bf16.gmra.mrb[0].mxu0 %v368
      %v523 = vpop.f32.mrb[0].mxu0
      %v524 = vadd.f32 0.0, %v523
      %v525 = vpop.f32.mrb[0].mxu0
      %v526 = vpop.f32.mrb[0].mxu0
      %v527 = vadd.f32 0.0, %v526
      %v528 = vpop.f32.mrb[0].mxu0
      %529 = vmatprep.mubr.bf16.mxu0 0
      %530 = vmatmul.mubr.bf16.gmra.mrb[0].mxu0 %v371
      %v531 = vpop.f32.mrb[0].mxu0
      %v532 = vadd.f32 0.0, %v531
      %v533 = vpop.f32.mrb[0].mxu0
      %v534 = vpop.f32.mrb[0].mxu0
      %v535 = vadd.f32 0.0, %v534
      %v536 = vpop.f32.mrb[0].mxu0
      %537 = vdwg.mxu0
      %v539 = vsel %vm324, %v255, 0
      %v542 = vsel %vm324, %v256, 0
      %v545 = vsel %vm324, %v257, 0
      %v548 = vsel %vm324, %v258, 0
      %v551 = vsel %vm324, %v259, 0
      %v554 = vsel %vm324, %v260, 0
      %v557 = vsel %vm324, %v261, 0
      %v560 = vsel %vm324, %v262, 0
      %v563 = vsel %vm324, %v263, 0
      %v566 = vsel %vm324, %v264, 0
      %v569 = vsel %vm324, %v265, 0
      %v572 = vsel %vm324, %v266, 0
      %v575 = vsel %vm324, %v267, 0
      %v578 = vsel %vm324, %v268, 0
      %v581 = vsel %vm324, %v269, 0
      %v584 = vsel %vm324, %v270, 0
      %v587 = vsel %vm373, %v272, 0
      %589 = vmatprep.subr.bf16.mxu0 0
      %590 = vmatpush1.bf16.msra.mxu0 %v587
      %591 = vmatprep.subr.bf16.mxu0 0
      %592 = vmatpush1.bf16.msra.mxu0 0
      %593 = vmatprep.subr.bf16.mxu0 0
      %594 = vmatpush1.bf16.msra.mxu0 0
      %595 = vmatprep.subr.bf16.mxu0 0
      %596 = vmatpush1.bf16.msra.mxu0 0
      %597 = vmatprep.subr.bf16.mxu0 0
      %598 = vmatpush1.bf16.msra.mxu0 0
      %599 = vmatprep.subr.bf16.mxu0 0
      %600 = vmatpush1.bf16.msra.mxu0 0
      %601 = vmatprep.subr.bf16.mxu0 0
      %602 = vmatpush1.bf16.msra.mxu0 0
      %603 = vmatprep.subr.bf16.mxu0 0
      %604 = vmatpush1.bf16.msra.mxu0 0
      %605 = vmatprep.subr.bf16.mxu0 0
      %606 = vmatpush1.bf16.msra.mxu0 0
      %607 = vmatprep.subr.bf16.mxu0 0
      %608 = vmatpush1.bf16.msra.mxu0 0
      %609 = vmatprep.subr.bf16.mxu0 0
      %610 = vmatpush1.bf16.msra.mxu0 0
      %611 = vmatprep.subr.bf16.mxu0 0
      %612 = vmatpush1.bf16.msra.mxu0 0
      %613 = vmatprep.subr.bf16.mxu0 0
      %614 = vmatpush1.bf16.msra.mxu0 0
      %615 = vmatprep.subr.bf16.mxu0 0
      %616 = vmatpush1.bf16.msra.mxu0 0
      %617 = vmatprep.subr.bf16.mxu0 0
      %618 = vmatpush1.bf16.msra.mxu0 0
      %619 = vmatprep.subr.bf16.mxu0 0
      %620 = vmatpush1.bf16.msra.mxu0 0
      %621 = vmatprep.mubr.bf16.mxu0 0
      %622 = vmatmul.mubr.bf16.gmra.mrb[0].mxu0 %v539
      %v623 = vpop.f32.mrb[0].mxu0
      %v624 = vadd.f32 %v412, %v623
      %v625 = vpop.f32.mrb[0].mxu0
      %v626 = vpop.f32.mrb[0].mxu0
      %v627 = vadd.f32 %v415, %v626
      %v628 = vpop.f32.mrb[0].mxu0
      %629 = vmatprep.mubr.bf16.mxu0 0
      %630 = vmatmul.mubr.bf16.gmra.mrb[0].mxu0 %v542
      %v631 = vpop.f32.mrb[0].mxu0
      %v632 = vadd.f32 %v420, %v631
      %v633 = vpop.f32.mrb[0].mxu0
      %v634 = vpop.f32.mrb[0].mxu0
      %v635 = vadd.f32 %v423, %v634
      %v636 = vpop.f32.mrb[0].mxu0
      %637 = vmatprep.mubr.bf16.mxu0 0
      %638 = vmatmul.mubr.bf16.gmra.mrb[0].mxu0 %v545
      %v639 = vpop.f32.mrb[0].mxu0
      %v640 = vadd.f32 %v428, %v639
      %v641 = vpop.f32.mrb[0].mxu0
      %v642 = vpop.f32.mrb[0].mxu0
      %v643 = vadd.f32 %v431, %v642
      %v644 = vpop.f32.mrb[0].mxu0
      %645 = vmatprep.mubr.bf16.mxu0 0
      %646 = vmatmul.mubr.bf16.gmra.mrb[0].mxu0 %v548
      %v647 = vpop.f32.mrb[0].mxu0
      %v648 = vadd.f32 %v436, %v647
      %v649 = vpop.f32.mrb[0].mxu0
      %v650 = vpop.f32.mrb[0].mxu0
      %v651 = vadd.f32 %v439, %v650
      %v652 = vpop.f32.mrb[0].mxu0
      %653 = vmatprep.mubr.bf16.mxu0 0
      %654 = vmatmul.mubr.bf16.gmra.mrb[0].mxu0 %v551
      %v655 = vpop.f32.mrb[0].mxu0
      %v656 = vadd.f32 %v444, %v655
      %v657 = vpop.f32.mrb[0].mxu0
      %v658 = vpop.f32.mrb[0].mxu0
      %v659 = vadd.f32 %v447, %v658
      %v660 = vpop.f32.mrb[0].mxu0
      %661 = vmatprep.mubr.bf16.mxu0 0
      %662 = vmatmul.mubr.bf16.gmra.mrb[0].mxu0 %v554
      %v663 = vpop.f32.mrb[0].mxu0
      %v664 = vadd.f32 %v452, %v663
      %v665 = vpop.f32.mrb[0].mxu0
      %v666 = vpop.f32.mrb[0].mxu0
      %v667 = vadd.f32 %v455, %v666
      %v668 = vpop.f32.mrb[0].mxu0
      %669 = vmatprep.mubr.bf16.mxu0 0
      %670 = vmatmul.mubr.bf16.gmra.mrb[0].mxu0 %v557
      %v671 = vpop.f32.mrb[0].mxu0
      %v672 = vadd.f32 %v460, %v671
      %v673 = vpop.f32.mrb[0].mxu0
      %v674 = vpop.f32.mrb[0].mxu0
      %v675 = vadd.f32 %v463, %v674
      %v676 = vpop.f32.mrb[0].mxu0
      %677 = vmatprep.mubr.bf16.mxu0 0
      %678 = vmatmul.mubr.bf16.gmra.mrb[0].mxu0 %v560
      %v679 = vpop.f32.mrb[0].mxu0
      %v680 = vadd.f32 %v468, %v679
      %v681 = vpop.f32.mrb[0].mxu0
      %v682 = vpop.f32.mrb[0].mxu0
      %v683 = vadd.f32 %v471, %v682
      %v684 = vpop.f32.mrb[0].mxu0
      %685 = vmatprep.mubr.bf16.mxu0 0
      %686 = vmatmul.mubr.bf16.gmra.mrb[0].mxu0 %v563
      %v687 = vpop.f32.mrb[0].mxu0
      %v688 = vadd.f32 %v476, %v687
      %v689 = vpop.f32.mrb[0].mxu0
      %v690 = vpop.f32.mrb[0].mxu0
      %v691 = vadd.f32 %v479, %v690
      %v692 = vpop.f32.mrb[0].mxu0
      %693 = vmatprep.mubr.bf16.mxu0 0
      %694 = vmatmul.mubr.bf16.gmra.mrb[0].mxu0 %v566
      %v695 = vpop.f32.mrb[0].mxu0
      %v696 = vadd.f32 %v484, %v695
      %v697 = vpop.f32.mrb[0].mxu0
      %v698 = vpop.f32.mrb[0].mxu0
      %v699 = vadd.f32 %v487, %v698
      %v700 = vpop.f32.mrb[0].mxu0
      %701 = vmatprep.mubr.bf16.mxu0 0
      %702 = vmatmul.mubr.bf16.gmra.mrb[0].mxu0 %v569
      %v703 = vpop.f32.mrb[0].mxu0
      %v704 = vadd.f32 %v492, %v703
      %v705 = vpop.f32.mrb[0].mxu0
      %v706 = vpop.f32.mrb[0].mxu0
      %v707 = vadd.f32 %v495, %v706
      %v708 = vpop.f32.mrb[0].mxu0
      %709 = vmatprep.mubr.bf16.mxu0 0
      %710 = vmatmul.mubr.bf16.gmra.mrb[0].mxu0 %v572
      %v711 = vpop.f32.mrb[0].mxu0
      %v712 = vadd.f32 %v500, %v711
      %v713 = vpop.f32.mrb[0].mxu0
      %v714 = vpop.f32.mrb[0].mxu0
      %v715 = vadd.f32 %v503, %v714
      %v716 = vpop.f32.mrb[0].mxu0
      %717 = vmatprep.mubr.bf16.mxu0 0
      %718 = vmatmul.mubr.bf16.gmra.mrb[0].mxu0 %v575
      %v719 = vpop.f32.mrb[0].mxu0
      %v720 = vadd.f32 %v508, %v719
      %v721 = vpop.f32.mrb[0].mxu0
      %v722 = vpop.f32.mrb[0].mxu0
      %v723 = vadd.f32 %v511, %v722
      %v724 = vpop.f32.mrb[0].mxu0
      %725 = vmatprep.mubr.bf16.mxu0 0
      %726 = vmatmul.mubr.bf16.gmra.mrb[0].mxu0 %v578
      %v727 = vpop.f32.mrb[0].mxu0
      %v728 = vadd.f32 %v516, %v727
      %v729 = vpop.f32.mrb[0].mxu0
      %v730 = vpop.f32.mrb[0].mxu0
      %v731 = vadd.f32 %v519, %v730
      %v732 = vpop.f32.mrb[0].mxu0
      %733 = vmatprep.mubr.bf16.mxu0 0
      %734 = vmatmul.mubr.bf16.gmra.mrb[0].mxu0 %v581
      %v735 = vpop.f32.mrb[0].mxu0
      %v736 = vadd.f32 %v524, %v735
      %v737 = vpop.f32.mrb[0].mxu0
      %v738 = vpop.f32.mrb[0].mxu0
      %v739 = vadd.f32 %v527, %v738
      %v740 = vpop.f32.mrb[0].mxu0
      %741 = vmatprep.mubr.bf16.mxu0 0
      %742 = vmatmul.mubr.bf16.gmra.mrb[0].mxu0 %v584
      %v743 = vpop.f32.mrb[0].mxu0
      %v744 = vadd.f32 %v532, %v743
      %v745 = vpop.f32.mrb[0].mxu0
      %v746 = vpop.f32.mrb[0].mxu0
      %v747 = vadd.f32 %v535, %v746
      %v748 = vpop.f32.mrb[0].mxu0
      %749 = vdwg.mxu0
      %v750 = vld [vmem:[%s206 + $0x2] sm:$0xff]
      %v751 = vld [vmem:[%s206 + $0xa] sm:$0xff]
      %v752 = vld [vmem:[%s206 + $0x1a] sm:$0xff]
      %v753 = vld [vmem:[%s206 + $0x22] sm:$0xff]
      %v754 = vld [vmem:[%s206 + $0x32] sm:$0xff]
      %v755 = vld [vmem:[%s206 + $0x3a] sm:$0xff]
      %v756 = vld [vmem:[%s206 + $0x4a] sm:$0xff]
      %v757 = vld [vmem:[%s206 + $0x52] sm:$0xff]
      %v758 = vld [vmem:[%s206 + $0x62] sm:$0xff]
      %v759 = vld [vmem:[%s206 + $0x6a] sm:$0xff]
      %v760 = vld [vmem:[%s206 + $0x7a] sm:$0xff]
      %v761 = vld [vmem:[%s206 + $0x82] sm:$0xff]
      %v762 = vld [vmem:[%s206 + $0x92] sm:$0xff]
      %v763 = vld [vmem:[%s206 + $0x9a] sm:$0xff]
      %v764 = vld [vmem:[%s206 + $0xaa] sm:$0xff]
      %v765 = vld [vmem:[%s206 + $0xb2] sm:$0xff]
      %v766 = vld [vmem:[%s206 + $0xc2] sm:$0xff]
      %v767 = vld [vmem:[%s206 + $0xca] sm:$0xff]
      %v768 = vld [vmem:[%s206 + $0xda] sm:$0xff]
      %v769 = vld [vmem:[%s206 + $0xe2] sm:$0xff]
      %v770 = vld [vmem:[%s206 + $0xf2] sm:$0xff]
      %v771 = vld [vmem:[%s206 + $0xfa] sm:$0xff]
      %v772 = vld [vmem:[%s206 + $0x10a] sm:$0xff]
      %v773 = vld [vmem:[%s206 + $0x112] sm:$0xff]
      %v774 = vld [vmem:[%s206 + $0x122] sm:$0xff]
      %v775 = vld [vmem:[%s206 + $0x12a] sm:$0xff]
      %v776 = vld [vmem:[%s206 + $0x13a] sm:$0xff]
      %v777 = vld [vmem:[%s206 + $0x142] sm:$0xff]
      %v778 = vld [vmem:[%s206 + $0x152] sm:$0xff]
      %v779 = vld [vmem:[%s206 + $0x15a] sm:$0xff]
      %v780 = vld [vmem:[%s206 + $0x16a] sm:$0xff]
      %v781 = vld [vmem:[%s206 + $0x172] sm:$0xff]
      %v782 = vpack.c.bf16 %v751, %v750
      %v783 = vpack.c.bf16 %v753, %v752
      %v784 = vpack.c.bf16 %v755, %v754
      %v785 = vpack.c.bf16 %v757, %v756
      %v786 = vpack.c.bf16 %v759, %v758
      %v787 = vpack.c.bf16 %v761, %v760
      %v788 = vpack.c.bf16 %v763, %v762
      %v789 = vpack.c.bf16 %v765, %v764
      %v790 = vpack.c.bf16 %v767, %v766
      %v791 = vpack.c.bf16 %v769, %v768
      %v792 = vpack.c.bf16 %v771, %v770
      %v793 = vpack.c.bf16 %v773, %v772
      %v794 = vpack.c.bf16 %v775, %v774
      %v795 = vpack.c.bf16 %v777, %v776
      %v796 = vpack.c.bf16 %v779, %v778
      %v797 = vpack.c.bf16 %v781, %v780
      %s798 = scalar_lea.vmem %s210, 8
      %v799 = vld [vmem:[%s798] sm:$0xf]
      %v800 = vpack.c.bf16 %v799, %v799
      %v802 = vsel %vm324, %v782, 0
      %v805 = vsel %vm324, %v783, 0
      %v808 = vsel %vm324, %v784, 0
      %v811 = vsel %vm324, %v785, 0
      %v814 = vsel %vm324, %v786, 0
      %v817 = vsel %vm324, %v787, 0
      %v820 = vsel %vm324, %v788, 0
      %v823 = vsel %vm324, %v789, 0
      %v826 = vsel %vm324, %v790, 0
      %v829 = vsel %vm324, %v791, 0
      %v832 = vsel %vm324, %v792, 0
      %v835 = vsel %vm324, %v793, 0
      %v838 = vsel %vm324, %v794, 0
      %v841 = vsel %vm324, %v795, 0
      %v844 = vsel %vm324, %v796, 0
      %v847 = vsel %vm324, %v797, 0
      %v850 = vsel %vm373, %v800, 0
      %852 = vmatprep.subr.bf16.mxu0 0
      %853 = vmatpush1.bf16.msra.mxu0 %v850
      %854 = vmatprep.subr.bf16.mxu0 0
      %855 = vmatpush1.bf16.msra.mxu0 0
      %856 = vmatprep.subr.bf16.mxu0 0
      %857 = vmatpush1.bf16.msra.mxu0 0
      %858 = vmatprep.subr.bf16.mxu0 0
      %859 = vmatpush1.bf16.msra.mxu0 0
      %860 = vmatprep.subr.bf16.mxu0 0
      %861 = vmatpush1.bf16.msra.mxu0 0
      %862 = vmatprep.subr.bf16.mxu0 0
      %863 = vmatpush1.bf16.msra.mxu0 0
      %864 = vmatprep.subr.bf16.mxu0 0
      %865 = vmatpush1.bf16.msra.mxu0 0
      %866 = vmatprep.subr.bf16.mxu0 0
      %867 = vmatpush1.bf16.msra.mxu0 0
      %868 = vmatprep.subr.bf16.mxu0 0
      %869 = vmatpush1.bf16.msra.mxu0 0
      %870 = vmatprep.subr.bf16.mxu0 0
      %871 = vmatpush1.bf16.msra.mxu0 0
      %872 = vmatprep.subr.bf16.mxu0 0
      %873 = vmatpush1.bf16.msra.mxu0 0
      %874 = vmatprep.subr.bf16.mxu0 0
      %875 = vmatpush1.bf16.msra.mxu0 0
      %876 = vmatprep.subr.bf16.mxu0 0
      %877 = vmatpush1.bf16.msra.mxu0 0
      %878 = vmatprep.subr.bf16.mxu0 0
      %879 = vmatpush1.bf16.msra.mxu0 0
      %880 = vmatprep.subr.bf16.mxu0 0
      %881 = vmatpush1.bf16.msra.mxu0 0
      %882 = vmatprep.subr.bf16.mxu0 0
      %883 = vmatpush1.bf16.msra.mxu0 0
      %884 = vmatprep.mubr.bf16.mxu0 0
      %885 = vmatmul.mubr.bf16.gmra.mrb[0].mxu0 %v802
      %v886 = vpop.f32.mrb[0].mxu0
      %v887 = vadd.f32 0.0, %v886
      %v888 = vpop.f32.mrb[0].mxu0
      %v889 = vpop.f32.mrb[0].mxu0
      %v890 = vadd.f32 0.0, %v889
      %v891 = vpop.f32.mrb[0].mxu0
      %892 = vmatprep.mubr.bf16.mxu0 0
      %893 = vmatmul.mubr.bf16.gmra.mrb[0].mxu0 %v805
      %v894 = vpop.f32.mrb[0].mxu0
      %v895 = vadd.f32 0.0, %v894
      %v896 = vpop.f32.mrb[0].mxu0
      %v897 = vpop.f32.mrb[0].mxu0
      %v898 = vadd.f32 0.0, %v897
      %v899 = vpop.f32.mrb[0].mxu0
      %900 = vmatprep.mubr.bf16.mxu0 0
      %901 = vmatmul.mubr.bf16.gmra.mrb[0].mxu0 %v808
      %v902 = vpop.f32.mrb[0].mxu0
      %v903 = vadd.f32 0.0, %v902
      %v904 = vpop.f32.mrb[0].mxu0
      %v905 = vpop.f32.mrb[0].mxu0
      %v906 = vadd.f32 0.0, %v905
      %v907 = vpop.f32.mrb[0].mxu0
      %908 = vmatprep.mubr.bf16.mxu0 0
      %909 = vmatmul.mubr.bf16.gmra.mrb[0].mxu0 %v811
      %v910 = vpop.f32.mrb[0].mxu0
      %v911 = vadd.f32 0.0, %v910
      %v912 = vpop.f32.mrb[0].mxu0
      %v913 = vpop.f32.mrb[0].mxu0
      %v914 = vadd.f32 0.0, %v913
      %v915 = vpop.f32.mrb[0].mxu0
      %916 = vmatprep.mubr.bf16.mxu0 0
      %917 = vmatmul.mubr.bf16.gmra.mrb[0].mxu0 %v814
      %v918 = vpop.f32.mrb[0].mxu0
      %v919 = vadd.f32 0.0, %v918
      %v920 = vpop.f32.mrb[0].mxu0
      %v921 = vpop.f32.mrb[0].mxu0
      %v922 = vadd.f32 0.0, %v921
      %v923 = vpop.f32.mrb[0].mxu0
      %924 = vmatprep.mubr.bf16.mxu0 0
      %925 = vmatmul.mubr.bf16.gmra.mrb[0].mxu0 %v817
      %v926 = vpop.f32.mrb[0].mxu0
      %v927 = vadd.f32 0.0, %v926
      %v928 = vpop.f32.mrb[0].mxu0
      %v929 = vpop.f32.mrb[0].mxu0
      %v930 = vadd.f32 0.0, %v929
      %v931 = vpop.f32.mrb[0].mxu0
      %932 = vmatprep.mubr.bf16.mxu0 0
      %933 = vmatmul.mubr.bf16.gmra.mrb[0].mxu0 %v820
      %v934 = vpop.f32.mrb[0].mxu0
      %v935 = vadd.f32 0.0, %v934
      %v936 = vpop.f32.mrb[0].mxu0
      %v937 = vpop.f32.mrb[0].mxu0
      %v938 = vadd.f32 0.0, %v937
      %v939 = vpop.f32.mrb[0].mxu0
      %940 = vmatprep.mubr.bf16.mxu0 0
      %941 = vmatmul.mubr.bf16.gmra.mrb[0].mxu0 %v823
      %v942 = vpop.f32.mrb[0].mxu0
      %v943 = vadd.f32 0.0, %v942
      %v944 = vpop.f32.mrb[0].mxu0
      %v945 = vpop.f32.mrb[0].mxu0
      %v946 = vadd.f32 0.0, %v945
      %v947 = vpop.f32.mrb[0].mxu0
      %948 = vmatprep.mubr.bf16.mxu0 0
      %949 = vmatmul.mubr.bf16.gmra.mrb[0].mxu0 %v826
      %v950 = vpop.f32.mrb[0].mxu0
      %v951 = vadd.f32 0.0, %v950
      %v952 = vpop.f32.mrb[0].mxu0
      %v953 = vpop.f32.mrb[0].mxu0
      %v954 = vadd.f32 0.0, %v953
      %v955 = vpop.f32.mrb[0].mxu0
      %956 = vmatprep.mubr.bf16.mxu0 0
      %957 = vmatmul.mubr.bf16.gmra.mrb[0].mxu0 %v829
      %v958 = vpop.f32.mrb[0].mxu0
      %v959 = vadd.f32 0.0, %v958
      %v960 = vpop.f32.mrb[0].mxu0
      %v961 = vpop.f32.mrb[0].mxu0
      %v962 = vadd.f32 0.0, %v961
      %v963 = vpop.f32.mrb[0].mxu0
      %964 = vmatprep.mubr.bf16.mxu0 0
      %965 = vmatmul.mubr.bf16.gmra.mrb[0].mxu0 %v832
      %v966 = vpop.f32.mrb[0].mxu0
      %v967 = vadd.f32 0.0, %v966
      %v968 = vpop.f32.mrb[0].mxu0
      %v969 = vpop.f32.mrb[0].mxu0
      %v970 = vadd.f32 0.0, %v969
      %v971 = vpop.f32.mrb[0].mxu0
      %972 = vmatprep.mubr.bf16.mxu0 0
      %973 = vmatmul.mubr.bf16.gmra.mrb[0].mxu0 %v835
      %v974 = vpop.f32.mrb[0].mxu0
      %v975 = vadd.f32 0.0, %v974
      %v976 = vpop.f32.mrb[0].mxu0
      %v977 = vpop.f32.mrb[0].mxu0
      %v978 = vadd.f32 0.0, %v977
      %v979 = vpop.f32.mrb[0].mxu0
      %980 = vmatprep.mubr.bf16.mxu0 0
      %981 = vmatmul.mubr.bf16.gmra.mrb[0].mxu0 %v838
      %v982 = vpop.f32.mrb[0].mxu0
      %v983 = vadd.f32 0.0, %v982
      %v984 = vpop.f32.mrb[0].mxu0
      %v985 = vpop.f32.mrb[0].mxu0
      %v986 = vadd.f32 0.0, %v985
      %v987 = vpop.f32.mrb[0].mxu0
      %988 = vmatprep.mubr.bf16.mxu0 0
      %989 = vmatmul.mubr.bf16.gmra.mrb[0].mxu0 %v841
      %v990 = vpop.f32.mrb[0].mxu0
      %v991 = vadd.f32 0.0, %v990
      %v992 = vpop.f32.mrb[0].mxu0
      %v993 = vpop.f32.mrb[0].mxu0
      %v994 = vadd.f32 0.0, %v993
      %v995 = vpop.f32.mrb[0].mxu0
      %996 = vmatprep.mubr.bf16.mxu0 0
      %997 = vmatmul.mubr.bf16.gmra.mrb[0].mxu0 %v844
      %v998 = vpop.f32.mrb[0].mxu0
      %v999 = vadd.f32 0.0, %v998
      %v1000 = vpop.f32.mrb[0].mxu0
      %v1001 = vpop.f32.mrb[0].mxu0
      %v1002 = vadd.f32 0.0, %v1001
      %v1003 = vpop.f32.mrb[0].mxu0
      %1004 = vmatprep.mubr.bf16.mxu0 0
      %1005 = vmatmul.mubr.bf16.gmra.mrb[0].mxu0 %v847
      %v1006 = vpop.f32.mrb[0].mxu0
      %v1007 = vadd.f32 0.0, %v1006
      %v1008 = vpop.f32.mrb[0].mxu0
      %v1009 = vpop.f32.mrb[0].mxu0
      %v1010 = vadd.f32 0.0, %v1009
      %v1011 = vpop.f32.mrb[0].mxu0
      %1012 = vdwg.mxu0
      %v1013 = vadd.f32 %v624, %v887
      %v1014 = vadd.f32 %v627, %v890
      %v1015 = vadd.f32 %v632, %v895
      %v1016 = vadd.f32 %v635, %v898
      %v1017 = vadd.f32 %v640, %v903
      %v1018 = vadd.f32 %v643, %v906
      %v1019 = vadd.f32 %v648, %v911
      %v1020 = vadd.f32 %v651, %v914
      %v1021 = vadd.f32 %v656, %v919
      %v1022 = vadd.f32 %v659, %v922
      %v1023 = vadd.f32 %v664, %v927
      %v1024 = vadd.f32 %v667, %v930
      %v1025 = vadd.f32 %v672, %v935
      %v1026 = vadd.f32 %v675, %v938
      %v1027 = vadd.f32 %v680, %v943
      %v1028 = vadd.f32 %v683, %v946
      %v1029 = vadd.f32 %v688, %v951
      %v1030 = vadd.f32 %v691, %v954
      %v1031 = vadd.f32 %v696, %v959
      %v1032 = vadd.f32 %v699, %v962
      %v1033 = vadd.f32 %v704, %v967
      %v1034 = vadd.f32 %v707, %v970
      %v1035 = vadd.f32 %v712, %v975
      %v1036 = vadd.f32 %v715, %v978
      %v1037 = vadd.f32 %v720, %v983
      %v1038 = vadd.f32 %v723, %v986
      %v1039 = vadd.f32 %v728, %v991
      %v1040 = vadd.f32 %v731, %v994
      %v1041 = vadd.f32 %v736, %v999
      %v1042 = vadd.f32 %v739, %v1002
      %v1043 = vadd.f32 %v744, %v1007
      %v1044 = vadd.f32 %v747, %v1010
      %s1045 = scalar_lea.vmem %s206, 24
      %v1046 = vld [vmem:[%s1045] sm:$0xff]
      %v1047 = vld [vmem:[%s1045 + $0x8] sm:$0xff]
      %v1048 = vld [vmem:[%s1045 + $0x18] sm:$0xff]
      %v1049 = vld [vmem:[%s1045 + $0x20] sm:$0xff]
      %v1050 = vld [vmem:[%s1045 + $0x30] sm:$0xff]
      %v1051 = vld [vmem:[%s1045 + $0x38] sm:$0xff]
      %v1052 = vld [vmem:[%s1045 + $0x48] sm:$0xff]
      %v1053 = vld [vmem:[%s1045 + $0x50] sm:$0xff]
      %v1054 = vld [vmem:[%s1045 + $0x60] sm:$0xff]
      %v1055 = vld [vmem:[%s1045 + $0x68] sm:$0xff]
      %v1056 = vld [vmem:[%s1045 + $0x78] sm:$0xff]
      %v1057 = vld [vmem:[%s1045 + $0x80] sm:$0xff]
      %v1058 = vld [vmem:[%s1045 + $0x90] sm:$0xff]
      %v1059 = vld [vmem:[%s1045 + $0x98] sm:$0xff]
      %v1060 = vld [vmem:[%s1045 + $0xa8] sm:$0xff]
      %v1061 = vld [vmem:[%s1045 + $0xb0] sm:$0xff]
      %v1062 = vld [vmem:[%s1045 + $0xc0] sm:$0xff]
      %v1063 = vld [vmem:[%s1045 + $0xc8] sm:$0xff]
      %v1064 = vld [vmem:[%s1045 + $0xd8] sm:$0xff]
      %v1065 = vld [vmem:[%s1045 + $0xe0] sm:$0xff]
      %v1066 = vld [vmem:[%s1045 + $0xf0] sm:$0xff]
      %v1067 = vld [vmem:[%s1045 + $0xf8] sm:$0xff]
      %v1068 = vld [vmem:[%s1045 + $0x108] sm:$0xff]
      %v1069 = vld [vmem:[%s1045 + $0x110] sm:$0xff]
      %v1070 = vld [vmem:[%s1045 + $0x120] sm:$0xff]
      %v1071 = vld [vmem:[%s1045 + $0x128] sm:$0xff]
      %v1072 = vld [vmem:[%s1045 + $0x138] sm:$0xff]
      %v1073 = vld [vmem:[%s1045 + $0x140] sm:$0xff]
      %v1074 = vld [vmem:[%s1045 + $0x150] sm:$0xff]
      %v1075 = vld [vmem:[%s1045 + $0x158] sm:$0xff]
      %v1076 = vld [vmem:[%s1045 + $0x168] sm:$0xff]
      %v1077 = vld [vmem:[%s1045 + $0x170] sm:$0xff]
      %v1078 = vpack.c.bf16 %v1047, %v1046
      %v1079 = vpack.c.bf16 %v1049, %v1048
      %v1080 = vpack.c.bf16 %v1051, %v1050
      %v1081 = vpack.c.bf16 %v1053, %v1052
      %v1082 = vpack.c.bf16 %v1055, %v1054
      %v1083 = vpack.c.bf16 %v1057, %v1056
      %v1084 = vpack.c.bf16 %v1059, %v1058
      %v1085 = vpack.c.bf16 %v1061, %v1060
      %v1086 = vpack.c.bf16 %v1063, %v1062
      %v1087 = vpack.c.bf16 %v1065, %v1064
      %v1088 = vpack.c.bf16 %v1067, %v1066
      %v1089 = vpack.c.bf16 %v1069, %v1068
      %v1090 = vpack.c.bf16 %v1071, %v1070
      %v1091 = vpack.c.bf16 %v1073, %v1072
      %v1092 = vpack.c.bf16 %v1075, %v1074
      %v1093 = vpack.c.bf16 %v1077, %v1076
      %s1094 = scalar_lea.vmem %s210, 12
      %v1095 = vld [vmem:[%s1094] sm:$0xf]
      %v1096 = vpack.c.bf16 %v1095, %v1095
      %v1098 = vsel %vm324, %v1078, 0
      %v1101 = vsel %vm324, %v1079, 0
      %v1104 = vsel %vm324, %v1080, 0
      %v1107 = vsel %vm324, %v1081, 0
      %v1110 = vsel %vm324, %v1082, 0
      %v1113 = vsel %vm324, %v1083, 0
      %v1116 = vsel %vm324, %v1084, 0
      %v1119 = vsel %vm324, %v1085, 0
      %v1122 = vsel %vm324, %v1086, 0
      %v1125 = vsel %vm324, %v1087, 0
      %v1128 = vsel %vm324, %v1088, 0
      %v1131 = vsel %vm324, %v1089, 0
      %v1134 = vsel %vm324, %v1090, 0
      %v1137 = vsel %vm324, %v1091, 0
      %v1140 = vsel %vm324, %v1092, 0
      %v1143 = vsel %vm324, %v1093, 0
      %v1146 = vsel %vm373, %v1096, 0
      %1148 = vmatprep.subr.bf16.mxu0 0
      %1149 = vmatpush1.bf16.msra.mxu0 %v1146
      %1150 = vmatprep.subr.bf16.mxu0 0
      %1151 = vmatpush1.bf16.msra.mxu0 0
      %1152 = vmatprep.subr.bf16.mxu0 0
      %1153 = vmatpush1.bf16.msra.mxu0 0
      %1154 = vmatprep.subr.bf16.mxu0 0
      %1155 = vmatpush1.bf16.msra.mxu0 0
      %1156 = vmatprep.subr.bf16.mxu0 0
      %1157 = vmatpush1.bf16.msra.mxu0 0
      %1158 = vmatprep.subr.bf16.mxu0 0
      %1159 = vmatpush1.bf16.msra.mxu0 0
      %1160 = vmatprep.subr.bf16.mxu0 0
      %1161 = vmatpush1.bf16.msra.mxu0 0
      %1162 = vmatprep.subr.bf16.mxu0 0
      %1163 = vmatpush1.bf16.msra.mxu0 0
      %1164 = vmatprep.subr.bf16.mxu0 0
      %1165 = vmatpush1.bf16.msra.mxu0 0
      %1166 = vmatprep.subr.bf16.mxu0 0
      %1167 = vmatpush1.bf16.msra.mxu0 0
      %1168 = vmatprep.subr.bf16.mxu0 0
      %1169 = vmatpush1.bf16.msra.mxu0 0
      %1170 = vmatprep.subr.bf16.mxu0 0
      %1171 = vmatpush1.bf16.msra.mxu0 0
      %1172 = vmatprep.subr.bf16.mxu0 0
      %1173 = vmatpush1.bf16.msra.mxu0 0
      %1174 = vmatprep.subr.bf16.mxu0 0
      %1175 = vmatpush1.bf16.msra.mxu0 0
      %1176 = vmatprep.subr.bf16.mxu0 0
      %1177 = vmatpush1.bf16.msra.mxu0 0
      %1178 = vmatprep.subr.bf16.mxu0 0
      %1179 = vmatpush1.bf16.msra.mxu0 0
      %1180 = vmatprep.mubr.bf16.mxu0 0
      %1181 = vmatmul.mubr.bf16.gmra.mrb[0].mxu0 %v1098
      %v1182 = vpop.f32.mrb[0].mxu0
      %v1183 = vadd.f32 0.0, %v1182
      %v1184 = vpop.f32.mrb[0].mxu0
      %v1185 = vpop.f32.mrb[0].mxu0
      %v1186 = vadd.f32 0.0, %v1185
      %v1187 = vpop.f32.mrb[0].mxu0
      %1188 = vmatprep.mubr.bf16.mxu0 0
      %1189 = vmatmul.mubr.bf16.gmra.mrb[0].mxu0 %v1101
      %v1190 = vpop.f32.mrb[0].mxu0
      %v1191 = vadd.f32 0.0, %v1190
      %v1192 = vpop.f32.mrb[0].mxu0
      %v1193 = vpop.f32.mrb[0].mxu0
      %v1194 = vadd.f32 0.0, %v1193
      %v1195 = vpop.f32.mrb[0].mxu0
      %1196 = vmatprep.mubr.bf16.mxu0 0
      %1197 = vmatmul.mubr.bf16.gmra.mrb[0].mxu0 %v1104
      %v1198 = vpop.f32.mrb[0].mxu0
      %v1199 = vadd.f32 0.0, %v1198
      %v1200 = vpop.f32.mrb[0].mxu0
      %v1201 = vpop.f32.mrb[0].mxu0
      %v1202 = vadd.f32 0.0, %v1201
      %v1203 = vpop.f32.mrb[0].mxu0
      %1204 = vmatprep.mubr.bf16.mxu0 0
      %1205 = vmatmul.mubr.bf16.gmra.mrb[0].mxu0 %v1107
      %v1206 = vpop.f32.mrb[0].mxu0
      %v1207 = vadd.f32 0.0, %v1206
      %v1208 = vpop.f32.mrb[0].mxu0
      %v1209 = vpop.f32.mrb[0].mxu0
      %v1210 = vadd.f32 0.0, %v1209
      %v1211 = vpop.f32.mrb[0].mxu0
      %1212 = vmatprep.mubr.bf16.mxu0 0
      %1213 = vmatmul.mubr.bf16.gmra.mrb[0].mxu0 %v1110
      %v1214 = vpop.f32.mrb[0].mxu0
      %v1215 = vadd.f32 0.0, %v1214
      %v1216 = vpop.f32.mrb[0].mxu0
      %v1217 = vpop.f32.mrb[0].mxu0
      %v1218 = vadd.f32 0.0, %v1217
      %v1219 = vpop.f32.mrb[0].mxu0
      %1220 = vmatprep.mubr.bf16.mxu0 0
      %1221 = vmatmul.mubr.bf16.gmra.mrb[0].mxu0 %v1113
      %v1222 = vpop.f32.mrb[0].mxu0
      %v1223 = vadd.f32 0.0, %v1222
      %v1224 = vpop.f32.mrb[0].mxu0
      %v1225 = vpop.f32.mrb[0].mxu0
      %v1226 = vadd.f32 0.0, %v1225
      %v1227 = vpop.f32.mrb[0].mxu0
      %1228 = vmatprep.mubr.bf16.mxu0 0
      %1229 = vmatmul.mubr.bf16.gmra.mrb[0].mxu0 %v1116
      %v1230 = vpop.f32.mrb[0].mxu0
      %v1231 = vadd.f32 0.0, %v1230
      %v1232 = vpop.f32.mrb[0].mxu0
      %v1233 = vpop.f32.mrb[0].mxu0
      %v1234 = vadd.f32 0.0, %v1233
      %v1235 = vpop.f32.mrb[0].mxu0
      %1236 = vmatprep.mubr.bf16.mxu0 0
      %1237 = vmatmul.mubr.bf16.gmra.mrb[0].mxu0 %v1119
      %v1238 = vpop.f32.mrb[0].mxu0
      %v1239 = vadd.f32 0.0, %v1238
      %v1240 = vpop.f32.mrb[0].mxu0
      %v1241 = vpop.f32.mrb[0].mxu0
      %v1242 = vadd.f32 0.0, %v1241
      %v1243 = vpop.f32.mrb[0].mxu0
      %1244 = vmatprep.mubr.bf16.mxu0 0
      %1245 = vmatmul.mubr.bf16.gmra.mrb[0].mxu0 %v1122
      %v1246 = vpop.f32.mrb[0].mxu0
      %v1247 = vadd.f32 0.0, %v1246
      %v1248 = vpop.f32.mrb[0].mxu0
      %v1249 = vpop.f32.mrb[0].mxu0
      %v1250 = vadd.f32 0.0, %v1249
      %v1251 = vpop.f32.mrb[0].mxu0
      %1252 = vmatprep.mubr.bf16.mxu0 0
      %1253 = vmatmul.mubr.bf16.gmra.mrb[0].mxu0 %v1125
      %v1254 = vpop.f32.mrb[0].mxu0
      %v1255 = vadd.f32 0.0, %v1254
      %v1256 = vpop.f32.mrb[0].mxu0
      %v1257 = vpop.f32.mrb[0].mxu0
      %v1258 = vadd.f32 0.0, %v1257
      %v1259 = vpop.f32.mrb[0].mxu0
      %1260 = vmatprep.mubr.bf16.mxu0 0
      %1261 = vmatmul.mubr.bf16.gmra.mrb[0].mxu0 %v1128
      %v1262 = vpop.f32.mrb[0].mxu0
      %v1263 = vadd.f32 0.0, %v1262
      %v1264 = vpop.f32.mrb[0].mxu0
      %v1265 = vpop.f32.mrb[0].mxu0
      %v1266 = vadd.f32 0.0, %v1265
      %v1267 = vpop.f32.mrb[0].mxu0
      %1268 = vmatprep.mubr.bf16.mxu0 0
      %1269 = vmatmul.mubr.bf16.gmra.mrb[0].mxu0 %v1131
      %v1270 = vpop.f32.mrb[0].mxu0
      %v1271 = vadd.f32 0.0, %v1270
      %v1272 = vpop.f32.mrb[0].mxu0
      %v1273 = vpop.f32.mrb[0].mxu0
      %v1274 = vadd.f32 0.0, %v1273
      %v1275 = vpop.f32.mrb[0].mxu0
      %1276 = vmatprep.mubr.bf16.mxu0 0
      %1277 = vmatmul.mubr.bf16.gmra.mrb[0].mxu0 %v1134
      %v1278 = vpop.f32.mrb[0].mxu0
      %v1279 = vadd.f32 0.0, %v1278
      %v1280 = vpop.f32.mrb[0].mxu0
      %v1281 = vpop.f32.mrb[0].mxu0
      %v1282 = vadd.f32 0.0, %v1281
      %v1283 = vpop.f32.mrb[0].mxu0
      %1284 = vmatprep.mubr.bf16.mxu0 0
      %1285 = vmatmul.mubr.bf16.gmra.mrb[0].mxu0 %v1137
      %v1286 = vpop.f32.mrb[0].mxu0
      %v1287 = vadd.f32 0.0, %v1286
      %v1288 = vpop.f32.mrb[0].mxu0
      %v1289 = vpop.f32.mrb[0].mxu0
      %v1290 = vadd.f32 0.0, %v1289
      %v1291 = vpop.f32.mrb[0].mxu0
      %1292 = vmatprep.mubr.bf16.mxu0 0
      %1293 = vmatmul.mubr.bf16.gmra.mrb[0].mxu0 %v1140
      %v1294 = vpop.f32.mrb[0].mxu0
      %v1295 = vadd.f32 0.0, %v1294
      %v1296 = vpop.f32.mrb[0].mxu0
      %v1297 = vpop.f32.mrb[0].mxu0
      %v1298 = vadd.f32 0.0, %v1297
      %v1299 = vpop.f32.mrb[0].mxu0
      %1300 = vmatprep.mubr.bf16.mxu0 0
      %1301 = vmatmul.mubr.bf16.gmra.mrb[0].mxu0 %v1143
      %v1302 = vpop.f32.mrb[0].mxu0
      %v1303 = vadd.f32 0.0, %v1302
      %v1304 = vpop.f32.mrb[0].mxu0
      %v1305 = vpop.f32.mrb[0].mxu0
      %v1306 = vadd.f32 0.0, %v1305
      %v1307 = vpop.f32.mrb[0].mxu0
      %1308 = vdwg.mxu0
      %v1309 = vadd.f32 %v1013, %v1183
      %v1310 = vadd.f32 %v1014, %v1186
      %v1311 = vadd.f32 %v1015, %v1191
      %v1312 = vadd.f32 %v1016, %v1194
      %v1313 = vadd.f32 %v1017, %v1199
      %v1314 = vadd.f32 %v1018, %v1202
      %v1315 = vadd.f32 %v1019, %v1207
      %v1316 = vadd.f32 %v1020, %v1210
      %v1317 = vadd.f32 %v1021, %v1215
      %v1318 = vadd.f32 %v1022, %v1218
      %v1319 = vadd.f32 %v1023, %v1223
      %v1320 = vadd.f32 %v1024, %v1226
      %v1321 = vadd.f32 %v1025, %v1231
      %v1322 = vadd.f32 %v1026, %v1234
      %v1323 = vadd.f32 %v1027, %v1239
      %v1324 = vadd.f32 %v1028, %v1242
      %v1325 = vadd.f32 %v1029, %v1247
      %v1326 = vadd.f32 %v1030, %v1250
      %v1327 = vadd.f32 %v1031, %v1255
      %v1328 = vadd.f32 %v1032, %v1258
      %v1329 = vadd.f32 %v1033, %v1263
      %v1330 = vadd.f32 %v1034, %v1266
      %v1331 = vadd.f32 %v1035, %v1271
      %v1332 = vadd.f32 %v1036, %v1274
      %v1333 = vadd.f32 %v1037, %v1279
      %v1334 = vadd.f32 %v1038, %v1282
      %v1335 = vadd.f32 %v1039, %v1287
      %v1336 = vadd.f32 %v1040, %v1290
      %v1337 = vadd.f32 %v1041, %v1295
      %v1338 = vadd.f32 %v1042, %v1298
      %v1339 = vadd.f32 %v1043, %v1303
      %v1340 = vadd.f32 %v1044, %v1306
      %v1341 = vld [vmem:[%s1045 + $0x1] sm:$0xff]
      %v1342 = vld [vmem:[%s1045 + $0x9] sm:$0xff]
      %v1343 = vld [vmem:[%s1045 + $0x19] sm:$0xff]
      %v1344 = vld [vmem:[%s1045 + $0x21] sm:$0xff]
      %v1345 = vld [vmem:[%s1045 + $0x31] sm:$0xff]
      %v1346 = vld [vmem:[%s1045 + $0x39] sm:$0xff]
      %v1347 = vld [vmem:[%s1045 + $0x49] sm:$0xff]
      %v1348 = vld [vmem:[%s1045 + $0x51] sm:$0xff]
      %v1349 = vld [vmem:[%s1045 + $0x61] sm:$0xff]
      %v1350 = vld [vmem:[%s1045 + $0x69] sm:$0xff]
      %v1351 = vld [vmem:[%s1045 + $0x79] sm:$0xff]
      %v1352 = vld [vmem:[%s1045 + $0x81] sm:$0xff]
      %v1353 = vld [vmem:[%s1045 + $0x91] sm:$0xff]
      %v1354 = vld [vmem:[%s1045 + $0x99] sm:$0xff]
      %v1355 = vld [vmem:[%s1045 + $0xa9] sm:$0xff]
      %v1356 = vld [vmem:[%s1045 + $0xb1] sm:$0xff]
      %v1357 = vld [vmem:[%s1045 + $0xc1] sm:$0xff]
      %v1358 = vld [vmem:[%s1045 + $0xc9] sm:$0xff]
      %v1359 = vld [vmem:[%s1045 + $0xd9] sm:$0xff]
      %v1360 = vld [vmem:[%s1045 + $0xe1] sm:$0xff]
      %v1361 = vld [vmem:[%s1045 + $0xf1] sm:$0xff]
      %v1362 = vld [vmem:[%s1045 + $0xf9] sm:$0xff]
      %v1363 = vld [vmem:[%s1045 + $0x109] sm:$0xff]
      %v1364 = vld [vmem:[%s1045 + $0x111] sm:$0xff]
      %v1365 = vld [vmem:[%s1045 + $0x121] sm:$0xff]
      %v1366 = vld [vmem:[%s1045 + $0x129] sm:$0xff]
      %v1367 = vld [vmem:[%s1045 + $0x139] sm:$0xff]
      %v1368 = vld [vmem:[%s1045 + $0x141] sm:$0xff]
      %v1369 = vld [vmem:[%s1045 + $0x151] sm:$0xff]
      %v1370 = vld [vmem:[%s1045 + $0x159] sm:$0xff]
      %v1371 = vld [vmem:[%s1045 + $0x169] sm:$0xff]
      %v1372 = vld [vmem:[%s1045 + $0x171] sm:$0xff]
      %v1373 = vpack.c.bf16 %v1342, %v1341
      %v1374 = vpack.c.bf16 %v1344, %v1343
      %v1375 = vpack.c.bf16 %v1346, %v1345
      %v1376 = vpack.c.bf16 %v1348, %v1347
      %v1377 = vpack.c.bf16 %v1350, %v1349
      %v1378 = vpack.c.bf16 %v1352, %v1351
      %v1379 = vpack.c.bf16 %v1354, %v1353
      %v1380 = vpack.c.bf16 %v1356, %v1355
      %v1381 = vpack.c.bf16 %v1358, %v1357
      %v1382 = vpack.c.bf16 %v1360, %v1359
      %v1383 = vpack.c.bf16 %v1362, %v1361
      %v1384 = vpack.c.bf16 %v1364, %v1363
      %v1385 = vpack.c.bf16 %v1366, %v1365
      %v1386 = vpack.c.bf16 %v1368, %v1367
      %v1387 = vpack.c.bf16 %v1370, %v1369
      %v1388 = vpack.c.bf16 %v1372, %v1371
      %s1389 = scalar_lea.vmem %s210, 16
      %v1390 = vld [vmem:[%s1389] sm:$0xf]
      %v1391 = vpack.c.bf16 %v1390, %v1390
      %v1393 = vsel %vm324, %v1373, 0
      %v1396 = vsel %vm324, %v1374, 0
      %v1399 = vsel %vm324, %v1375, 0
      %v1402 = vsel %vm324, %v1376, 0
      %v1405 = vsel %vm324, %v1377, 0
      %v1408 = vsel %vm324, %v1378, 0
      %v1411 = vsel %vm324, %v1379, 0
      %v1414 = vsel %vm324, %v1380, 0
      %v1417 = vsel %vm324, %v1381, 0
      %v1420 = vsel %vm324, %v1382, 0
      %v1423 = vsel %vm324, %v1383, 0
      %v1426 = vsel %vm324, %v1384, 0
      %v1429 = vsel %vm324, %v1385, 0
      %v1432 = vsel %vm324, %v1386, 0
      %v1435 = vsel %vm324, %v1387, 0
      %v1438 = vsel %vm324, %v1388, 0
      %v1441 = vsel %vm373, %v1391, 0
      %1443 = vmatprep.subr.bf16.mxu0 0
      %1444 = vmatpush1.bf16.msra.mxu0 %v1441
      %1445 = vmatprep.subr.bf16.mxu0 0
      %1446 = vmatpush1.bf16.msra.mxu0 0
      %1447 = vmatprep.subr.bf16.mxu0 0
      %1448 = vmatpush1.bf16.msra.mxu0 0
      %1449 = vmatprep.subr.bf16.mxu0 0
      %1450 = vmatpush1.bf16.msra.mxu0 0
      %1451 = vmatprep.subr.bf16.mxu0 0
      %1452 = vmatpush1.bf16.msra.mxu0 0
      %1453 = vmatprep.subr.bf16.mxu0 0
      %1454 = vmatpush1.bf16.msra.mxu0 0
      %1455 = vmatprep.subr.bf16.mxu0 0
      %1456 = vmatpush1.bf16.msra.mxu0 0
      %1457 = vmatprep.subr.bf16.mxu0 0
      %1458 = vmatpush1.bf16.msra.mxu0 0
      %1459 = vmatprep.subr.bf16.mxu0 0
      %1460 = vmatpush1.bf16.msra.mxu0 0
      %1461 = vmatprep.subr.bf16.mxu0 0
      %1462 = vmatpush1.bf16.msra.mxu0 0
      %1463 = vmatprep.subr.bf16.mxu0 0
      %1464 = vmatpush1.bf16.msra.mxu0 0
      %1465 = vmatprep.subr.bf16.mxu0 0
      %1466 = vmatpush1.bf16.msra.mxu0 0
      %1467 = vmatprep.subr.bf16.mxu0 0
      %1468 = vmatpush1.bf16.msra.mxu0 0
      %1469 = vmatprep.subr.bf16.mxu0 0
      %1470 = vmatpush1.bf16.msra.mxu0 0
      %1471 = vmatprep.subr.bf16.mxu0 0
      %1472 = vmatpush1.bf16.msra.mxu0 0
      %1473 = vmatprep.subr.bf16.mxu0 0
      %1474 = vmatpush1.bf16.msra.mxu0 0
      %1475 = vmatprep.mubr.bf16.mxu0 0
      %1476 = vmatmul.mubr.bf16.gmra.mrb[0].mxu0 %v1393
      %v1477 = vpop.f32.mrb[0].mxu0
      %v1478 = vadd.f32 0.0, %v1477
      %v1479 = vpop.f32.mrb[0].mxu0
      %v1480 = vpop.f32.mrb[0].mxu0
      %v1481 = vadd.f32 0.0, %v1480
      %v1482 = vpop.f32.mrb[0].mxu0
      %1483 = vmatprep.mubr.bf16.mxu0 0
      %1484 = vmatmul.mubr.bf16.gmra.mrb[0].mxu0 %v1396
      %v1485 = vpop.f32.mrb[0].mxu0
      %v1486 = vadd.f32 0.0, %v1485
      %v1487 = vpop.f32.mrb[0].mxu0
      %v1488 = vpop.f32.mrb[0].mxu0
      %v1489 = vadd.f32 0.0, %v1488
      %v1490 = vpop.f32.mrb[0].mxu0
      %1491 = vmatprep.mubr.bf16.mxu0 0
      %1492 = vmatmul.mubr.bf16.gmra.mrb[0].mxu0 %v1399
      %v1493 = vpop.f32.mrb[0].mxu0
      %v1494 = vadd.f32 0.0, %v1493
      %v1495 = vpop.f32.mrb[0].mxu0
      %v1496 = vpop.f32.mrb[0].mxu0
      %v1497 = vadd.f32 0.0, %v1496
      %v1498 = vpop.f32.mrb[0].mxu0
      %1499 = vmatprep.mubr.bf16.mxu0 0
      %1500 = vmatmul.mubr.bf16.gmra.mrb[0].mxu0 %v1402
      %v1501 = vpop.f32.mrb[0].mxu0
      %v1502 = vadd.f32 0.0, %v1501
      %v1503 = vpop.f32.mrb[0].mxu0
      %v1504 = vpop.f32.mrb[0].mxu0
      %v1505 = vadd.f32 0.0, %v1504
      %v1506 = vpop.f32.mrb[0].mxu0
      %1507 = vmatprep.mubr.bf16.mxu0 0
      %1508 = vmatmul.mubr.bf16.gmra.mrb[0].mxu0 %v1405
      %v1509 = vpop.f32.mrb[0].mxu0
      %v1510 = vadd.f32 0.0, %v1509
      %v1511 = vpop.f32.mrb[0].mxu0
      %v1512 = vpop.f32.mrb[0].mxu0
      %v1513 = vadd.f32 0.0, %v1512
      %v1514 = vpop.f32.mrb[0].mxu0
      %1515 = vmatprep.mubr.bf16.mxu0 0
      %1516 = vmatmul.mubr.bf16.gmra.mrb[0].mxu0 %v1408
      %v1517 = vpop.f32.mrb[0].mxu0
      %v1518 = vadd.f32 0.0, %v1517
      %v1519 = vpop.f32.mrb[0].mxu0
      %v1520 = vpop.f32.mrb[0].mxu0
      %v1521 = vadd.f32 0.0, %v1520
      %v1522 = vpop.f32.mrb[0].mxu0
      %1523 = vmatprep.mubr.bf16.mxu0 0
      %1524 = vmatmul.mubr.bf16.gmra.mrb[0].mxu0 %v1411
      %v1525 = vpop.f32.mrb[0].mxu0
      %v1526 = vadd.f32 0.0, %v1525
      %v1527 = vpop.f32.mrb[0].mxu0
      %v1528 = vpop.f32.mrb[0].mxu0
      %v1529 = vadd.f32 0.0, %v1528
      %v1530 = vpop.f32.mrb[0].mxu0
      %1531 = vmatprep.mubr.bf16.mxu0 0
      %1532 = vmatmul.mubr.bf16.gmra.mrb[0].mxu0 %v1414
      %v1533 = vpop.f32.mrb[0].mxu0
      %v1534 = vadd.f32 0.0, %v1533
      %v1535 = vpop.f32.mrb[0].mxu0
      %v1536 = vpop.f32.mrb[0].mxu0
      %v1537 = vadd.f32 0.0, %v1536
      %v1538 = vpop.f32.mrb[0].mxu0
      %1539 = vmatprep.mubr.bf16.mxu0 0
      %1540 = vmatmul.mubr.bf16.gmra.mrb[0].mxu0 %v1417
      %v1541 = vpop.f32.mrb[0].mxu0
      %v1542 = vadd.f32 0.0, %v1541
      %v1543 = vpop.f32.mrb[0].mxu0
      %v1544 = vpop.f32.mrb[0].mxu0
      %v1545 = vadd.f32 0.0, %v1544
      %v1546 = vpop.f32.mrb[0].mxu0
      %1547 = vmatprep.mubr.bf16.mxu0 0
      %1548 = vmatmul.mubr.bf16.gmra.mrb[0].mxu0 %v1420
      %v1549 = vpop.f32.mrb[0].mxu0
      %v1550 = vadd.f32 0.0, %v1549
      %v1551 = vpop.f32.mrb[0].mxu0
      %v1552 = vpop.f32.mrb[0].mxu0
      %v1553 = vadd.f32 0.0, %v1552
      %v1554 = vpop.f32.mrb[0].mxu0
      %1555 = vmatprep.mubr.bf16.mxu0 0
      %1556 = vmatmul.mubr.bf16.gmra.mrb[0].mxu0 %v1423
      %v1557 = vpop.f32.mrb[0].mxu0
      %v1558 = vadd.f32 0.0, %v1557
      %v1559 = vpop.f32.mrb[0].mxu0
      %v1560 = vpop.f32.mrb[0].mxu0
      %v1561 = vadd.f32 0.0, %v1560
      %v1562 = vpop.f32.mrb[0].mxu0
      %1563 = vmatprep.mubr.bf16.mxu0 0
      %1564 = vmatmul.mubr.bf16.gmra.mrb[0].mxu0 %v1426
      %v1565 = vpop.f32.mrb[0].mxu0
      %v1566 = vadd.f32 0.0, %v1565
      %v1567 = vpop.f32.mrb[0].mxu0
      %v1568 = vpop.f32.mrb[0].mxu0
      %v1569 = vadd.f32 0.0, %v1568
      %v1570 = vpop.f32.mrb[0].mxu0
      %1571 = vmatprep.mubr.bf16.mxu0 0
      %1572 = vmatmul.mubr.bf16.gmra.mrb[0].mxu0 %v1429
      %v1573 = vpop.f32.mrb[0].mxu0
      %v1574 = vadd.f32 0.0, %v1573
      %v1575 = vpop.f32.mrb[0].mxu0
      %v1576 = vpop.f32.mrb[0].mxu0
      %v1577 = vadd.f32 0.0, %v1576
      %v1578 = vpop.f32.mrb[0].mxu0
      %1579 = vmatprep.mubr.bf16.mxu0 0
      %1580 = vmatmul.mubr.bf16.gmra.mrb[0].mxu0 %v1432
      %v1581 = vpop.f32.mrb[0].mxu0
      %v1582 = vadd.f32 0.0, %v1581
      %v1583 = vpop.f32.mrb[0].mxu0
      %v1584 = vpop.f32.mrb[0].mxu0
      %v1585 = vadd.f32 0.0, %v1584
      %v1586 = vpop.f32.mrb[0].mxu0
      %1587 = vmatprep.mubr.bf16.mxu0 0
      %1588 = vmatmul.mubr.bf16.gmra.mrb[0].mxu0 %v1435
      %v1589 = vpop.f32.mrb[0].mxu0
      %v1590 = vadd.f32 0.0, %v1589
      %v1591 = vpop.f32.mrb[0].mxu0
      %v1592 = vpop.f32.mrb[0].mxu0
      %v1593 = vadd.f32 0.0, %v1592
      %v1594 = vpop.f32.mrb[0].mxu0
      %1595 = vmatprep.mubr.bf16.mxu0 0
      %1596 = vmatmul.mubr.bf16.gmra.mrb[0].mxu0 %v1438
      %v1597 = vpop.f32.mrb[0].mxu0
      %v1598 = vadd.f32 0.0, %v1597
      %v1599 = vpop.f32.mrb[0].mxu0
      %v1600 = vpop.f32.mrb[0].mxu0
      %v1601 = vadd.f32 0.0, %v1600
      %v1602 = vpop.f32.mrb[0].mxu0
      %1603 = vdwg.mxu0
      %v1604 = vadd.f32 %v1309, %v1478
      %v1605 = vadd.f32 %v1310, %v1481
      %v1606 = vadd.f32 %v1311, %v1486
      %v1607 = vadd.f32 %v1312, %v1489
      %v1608 = vadd.f32 %v1313, %v1494
      %v1609 = vadd.f32 %v1314, %v1497
      %v1610 = vadd.f32 %v1315, %v1502
      %v1611 = vadd.f32 %v1316, %v1505
      %v1612 = vadd.f32 %v1317, %v1510
      %v1613 = vadd.f32 %v1318, %v1513
      %v1614 = vadd.f32 %v1319, %v1518
      %v1615 = vadd.f32 %v1320, %v1521
      %v1616 = vadd.f32 %v1321, %v1526
      %v1617 = vadd.f32 %v1322, %v1529
      %v1618 = vadd.f32 %v1323, %v1534
      %v1619 = vadd.f32 %v1324, %v1537
      %v1620 = vadd.f32 %v1325, %v1542
      %v1621 = vadd.f32 %v1326, %v1545
      %v1622 = vadd.f32 %v1327, %v1550
      %v1623 = vadd.f32 %v1328, %v1553
      %v1624 = vadd.f32 %v1329, %v1558
      %v1625 = vadd.f32 %v1330, %v1561
      %v1626 = vadd.f32 %v1331, %v1566
      %v1627 = vadd.f32 %v1332, %v1569
      %v1628 = vadd.f32 %v1333, %v1574
      %v1629 = vadd.f32 %v1334, %v1577
      %v1630 = vadd.f32 %v1335, %v1582
      %v1631 = vadd.f32 %v1336, %v1585
      %v1632 = vadd.f32 %v1337, %v1590
      %v1633 = vadd.f32 %v1338, %v1593
      %v1634 = vadd.f32 %v1339, %v1598
      %v1635 = vadd.f32 %v1340, %v1601
      %v1636 = vld [vmem:[%s1045 + $0x2] sm:$0xff]
      %v1637 = vld [vmem:[%s1045 + $0xa] sm:$0xff]
      %v1638 = vld [vmem:[%s1045 + $0x1a] sm:$0xff]
      %v1639 = vld [vmem:[%s1045 + $0x22] sm:$0xff]
      %v1640 = vld [vmem:[%s1045 + $0x32] sm:$0xff]
      %v1641 = vld [vmem:[%s1045 + $0x3a] sm:$0xff]
      %v1642 = vld [vmem:[%s1045 + $0x4a] sm:$0xff]
      %v1643 = vld [vmem:[%s1045 + $0x52] sm:$0xff]
      %v1644 = vld [vmem:[%s1045 + $0x62] sm:$0xff]
      %v1645 = vld [vmem:[%s1045 + $0x6a] sm:$0xff]
      %v1646 = vld [vmem:[%s1045 + $0x7a] sm:$0xff]
      %v1647 = vld [vmem:[%s1045 + $0x82] sm:$0xff]
      %v1648 = vld [vmem:[%s1045 + $0x92] sm:$0xff]
      %v1649 = vld [vmem:[%s1045 + $0x9a] sm:$0xff]
      %v1650 = vld [vmem:[%s1045 + $0xaa] sm:$0xff]
      %v1651 = vld [vmem:[%s1045 + $0xb2] sm:$0xff]
      %v1652 = vld [vmem:[%s1045 + $0xc2] sm:$0xff]
      %v1653 = vld [vmem:[%s1045 + $0xca] sm:$0xff]
      %v1654 = vld [vmem:[%s1045 + $0xda] sm:$0xff]
      %v1655 = vld [vmem:[%s1045 + $0xe2] sm:$0xff]
      %v1656 = vld [vmem:[%s1045 + $0xf2] sm:$0xff]
      %v1657 = vld [vmem:[%s1045 + $0xfa] sm:$0xff]
      %v1658 = vld [vmem:[%s1045 + $0x10a] sm:$0xff]
      %v1659 = vld [vmem:[%s1045 + $0x112] sm:$0xff]
      %v1660 = vld [vmem:[%s1045 + $0x122] sm:$0xff]
      %v1661 = vld [vmem:[%s1045 + $0x12a] sm:$0xff]
      %v1662 = vld [vmem:[%s1045 + $0x13a] sm:$0xff]
      %v1663 = vld [vmem:[%s1045 + $0x142] sm:$0xff]
      %v1664 = vld [vmem:[%s1045 + $0x152] sm:$0xff]
      %v1665 = vld [vmem:[%s1045 + $0x15a] sm:$0xff]
      %v1666 = vld [vmem:[%s1045 + $0x16a] sm:$0xff]
      %v1667 = vld [vmem:[%s1045 + $0x172] sm:$0xff]
      %v1668 = vpack.c.bf16 %v1637, %v1636
      %v1669 = vpack.c.bf16 %v1639, %v1638
      %v1670 = vpack.c.bf16 %v1641, %v1640
      %v1671 = vpack.c.bf16 %v1643, %v1642
      %v1672 = vpack.c.bf16 %v1645, %v1644
      %v1673 = vpack.c.bf16 %v1647, %v1646
      %v1674 = vpack.c.bf16 %v1649, %v1648
      %v1675 = vpack.c.bf16 %v1651, %v1650
      %v1676 = vpack.c.bf16 %v1653, %v1652
      %v1677 = vpack.c.bf16 %v1655, %v1654
      %v1678 = vpack.c.bf16 %v1657, %v1656
      %v1679 = vpack.c.bf16 %v1659, %v1658
      %v1680 = vpack.c.bf16 %v1661, %v1660
      %v1681 = vpack.c.bf16 %v1663, %v1662
      %v1682 = vpack.c.bf16 %v1665, %v1664
      %v1683 = vpack.c.bf16 %v1667, %v1666
      %s1684 = scalar_lea.vmem %s210, 20
      %v1685 = vld [vmem:[%s1684] sm:$0xf]
      %v1686 = vpack.c.bf16 %v1685, %v1685
      %v1688 = vsel %vm324, %v1668, 0
      %v1691 = vsel %vm324, %v1669, 0
      %v1694 = vsel %vm324, %v1670, 0
      %v1697 = vsel %vm324, %v1671, 0
      %v1700 = vsel %vm324, %v1672, 0
      %v1703 = vsel %vm324, %v1673, 0
      %v1706 = vsel %vm324, %v1674, 0
      %v1709 = vsel %vm324, %v1675, 0
      %v1712 = vsel %vm324, %v1676, 0
      %v1715 = vsel %vm324, %v1677, 0
      %v1718 = vsel %vm324, %v1678, 0
      %v1721 = vsel %vm324, %v1679, 0
      %v1724 = vsel %vm324, %v1680, 0
      %v1727 = vsel %vm324, %v1681, 0
      %v1730 = vsel %vm324, %v1682, 0
      %v1733 = vsel %vm324, %v1683, 0
      %v1736 = vsel %vm373, %v1686, 0
      %1738 = vmatprep.subr.bf16.mxu0 0
      %1739 = vmatpush1.bf16.msra.mxu0 %v1736
      %1740 = vmatprep.subr.bf16.mxu0 0
      %1741 = vmatpush1.bf16.msra.mxu0 0
      %1742 = vmatprep.subr.bf16.mxu0 0
      %1743 = vmatpush1.bf16.msra.mxu0 0
      %1744 = vmatprep.subr.bf16.mxu0 0
      %1745 = vmatpush1.bf16.msra.mxu0 0
      %1746 = vmatprep.subr.bf16.mxu0 0
      %1747 = vmatpush1.bf16.msra.mxu0 0
      %1748 = vmatprep.subr.bf16.mxu0 0
      %1749 = vmatpush1.bf16.msra.mxu0 0
      %1750 = vmatprep.subr.bf16.mxu0 0
      %1751 = vmatpush1.bf16.msra.mxu0 0
      %1752 = vmatprep.subr.bf16.mxu0 0
      %1753 = vmatpush1.bf16.msra.mxu0 0
      %1754 = vmatprep.subr.bf16.mxu0 0
      %1755 = vmatpush1.bf16.msra.mxu0 0
      %1756 = vmatprep.subr.bf16.mxu0 0
      %1757 = vmatpush1.bf16.msra.mxu0 0
      %1758 = vmatprep.subr.bf16.mxu0 0
      %1759 = vmatpush1.bf16.msra.mxu0 0
      %1760 = vmatprep.subr.bf16.mxu0 0
      %1761 = vmatpush1.bf16.msra.mxu0 0
      %1762 = vmatprep.subr.bf16.mxu0 0
      %1763 = vmatpush1.bf16.msra.mxu0 0
      %1764 = vmatprep.subr.bf16.mxu0 0
      %1765 = vmatpush1.bf16.msra.mxu0 0
      %1766 = vmatprep.subr.bf16.mxu0 0
      %1767 = vmatpush1.bf16.msra.mxu0 0
      %1768 = vmatprep.subr.bf16.mxu0 0
      %1769 = vmatpush1.bf16.msra.mxu0 0
      %1770 = vmatprep.mubr.bf16.mxu0 0
      %1771 = vmatmul.mubr.bf16.gmra.mrb[0].mxu0 %v1688
      %v1772 = vpop.f32.mrb[0].mxu0
      %v1773 = vadd.f32 0.0, %v1772
      %v1774 = vpop.f32.mrb[0].mxu0
      %v1775 = vpop.f32.mrb[0].mxu0
      %v1776 = vadd.f32 0.0, %v1775
      %v1777 = vpop.f32.mrb[0].mxu0
      %1778 = vmatprep.mubr.bf16.mxu0 0
      %1779 = vmatmul.mubr.bf16.gmra.mrb[0].mxu0 %v1691
      %v1780 = vpop.f32.mrb[0].mxu0
      %v1781 = vadd.f32 0.0, %v1780
      %v1782 = vpop.f32.mrb[0].mxu0
      %v1783 = vpop.f32.mrb[0].mxu0
      %v1784 = vadd.f32 0.0, %v1783
      %v1785 = vpop.f32.mrb[0].mxu0
      %1786 = vmatprep.mubr.bf16.mxu0 0
      %1787 = vmatmul.mubr.bf16.gmra.mrb[0].mxu0 %v1694
      %v1788 = vpop.f32.mrb[0].mxu0
      %v1789 = vadd.f32 0.0, %v1788
      %v1790 = vpop.f32.mrb[0].mxu0
      %v1791 = vpop.f32.mrb[0].mxu0
      %v1792 = vadd.f32 0.0, %v1791
      %v1793 = vpop.f32.mrb[0].mxu0
      %1794 = vmatprep.mubr.bf16.mxu0 0
      %1795 = vmatmul.mubr.bf16.gmra.mrb[0].mxu0 %v1697
      %v1796 = vpop.f32.mrb[0].mxu0
      %v1797 = vadd.f32 0.0, %v1796
      %v1798 = vpop.f32.mrb[0].mxu0
      %v1799 = vpop.f32.mrb[0].mxu0
      %v1800 = vadd.f32 0.0, %v1799
      %v1801 = vpop.f32.mrb[0].mxu0
      %1802 = vmatprep.mubr.bf16.mxu0 0
      %1803 = vmatmul.mubr.bf16.gmra.mrb[0].mxu0 %v1700
      %v1804 = vpop.f32.mrb[0].mxu0
      %v1805 = vadd.f32 0.0, %v1804
      %v1806 = vpop.f32.mrb[0].mxu0
      %v1807 = vpop.f32.mrb[0].mxu0
      %v1808 = vadd.f32 0.0, %v1807
      %v1809 = vpop.f32.mrb[0].mxu0
      %1810 = vmatprep.mubr.bf16.mxu0 0
      %1811 = vmatmul.mubr.bf16.gmra.mrb[0].mxu0 %v1703
      %v1812 = vpop.f32.mrb[0].mxu0
      %v1813 = vadd.f32 0.0, %v1812
      %v1814 = vpop.f32.mrb[0].mxu0
      %v1815 = vpop.f32.mrb[0].mxu0
      %v1816 = vadd.f32 0.0, %v1815
      %v1817 = vpop.f32.mrb[0].mxu0
      %1818 = vmatprep.mubr.bf16.mxu0 0
      %1819 = vmatmul.mubr.bf16.gmra.mrb[0].mxu0 %v1706
      %v1820 = vpop.f32.mrb[0].mxu0
      %v1821 = vadd.f32 0.0, %v1820
      %v1822 = vpop.f32.mrb[0].mxu0
      %v1823 = vpop.f32.mrb[0].mxu0
      %v1824 = vadd.f32 0.0, %v1823
      %v1825 = vpop.f32.mrb[0].mxu0
      %1826 = vmatprep.mubr.bf16.mxu0 0
      %1827 = vmatmul.mubr.bf16.gmra.mrb[0].mxu0 %v1709
      %v1828 = vpop.f32.mrb[0].mxu0
      %v1829 = vadd.f32 0.0, %v1828
      %v1830 = vpop.f32.mrb[0].mxu0
      %v1831 = vpop.f32.mrb[0].mxu0
      %v1832 = vadd.f32 0.0, %v1831
      %v1833 = vpop.f32.mrb[0].mxu0
      %1834 = vmatprep.mubr.bf16.mxu0 0
      %1835 = vmatmul.mubr.bf16.gmra.mrb[0].mxu0 %v1712
      %v1836 = vpop.f32.mrb[0].mxu0
      %v1837 = vadd.f32 0.0, %v1836
      %v1838 = vpop.f32.mrb[0].mxu0
      %v1839 = vpop.f32.mrb[0].mxu0
      %v1840 = vadd.f32 0.0, %v1839
      %v1841 = vpop.f32.mrb[0].mxu0
      %1842 = vmatprep.mubr.bf16.mxu0 0
      %1843 = vmatmul.mubr.bf16.gmra.mrb[0].mxu0 %v1715
      %v1844 = vpop.f32.mrb[0].mxu0
      %v1845 = vadd.f32 0.0, %v1844
      %v1846 = vpop.f32.mrb[0].mxu0
      %v1847 = vpop.f32.mrb[0].mxu0
      %v1848 = vadd.f32 0.0, %v1847
      %v1849 = vpop.f32.mrb[0].mxu0
      %1850 = vmatprep.mubr.bf16.mxu0 0
      %1851 = vmatmul.mubr.bf16.gmra.mrb[0].mxu0 %v1718
      %v1852 = vpop.f32.mrb[0].mxu0
      %v1853 = vadd.f32 0.0, %v1852
      %v1854 = vpop.f32.mrb[0].mxu0
      %v1855 = vpop.f32.mrb[0].mxu0
      %v1856 = vadd.f32 0.0, %v1855
      %v1857 = vpop.f32.mrb[0].mxu0
      %1858 = vmatprep.mubr.bf16.mxu0 0
      %1859 = vmatmul.mubr.bf16.gmra.mrb[0].mxu0 %v1721
      %v1860 = vpop.f32.mrb[0].mxu0
      %v1861 = vadd.f32 0.0, %v1860
      %v1862 = vpop.f32.mrb[0].mxu0
      %v1863 = vpop.f32.mrb[0].mxu0
      %v1864 = vadd.f32 0.0, %v1863
      %v1865 = vpop.f32.mrb[0].mxu0
      %1866 = vmatprep.mubr.bf16.mxu0 0
      %1867 = vmatmul.mubr.bf16.gmra.mrb[0].mxu0 %v1724
      %v1868 = vpop.f32.mrb[0].mxu0
      %v1869 = vadd.f32 0.0, %v1868
      %v1870 = vpop.f32.mrb[0].mxu0
      %v1871 = vpop.f32.mrb[0].mxu0
      %v1872 = vadd.f32 0.0, %v1871
      %v1873 = vpop.f32.mrb[0].mxu0
      %1874 = vmatprep.mubr.bf16.mxu0 0
      %1875 = vmatmul.mubr.bf16.gmra.mrb[0].mxu0 %v1727
      %v1876 = vpop.f32.mrb[0].mxu0
      %v1877 = vadd.f32 0.0, %v1876
      %v1878 = vpop.f32.mrb[0].mxu0
      %v1879 = vpop.f32.mrb[0].mxu0
      %v1880 = vadd.f32 0.0, %v1879
      %v1881 = vpop.f32.mrb[0].mxu0
      %1882 = vmatprep.mubr.bf16.mxu0 0
      %1883 = vmatmul.mubr.bf16.gmra.mrb[0].mxu0 %v1730
      %v1884 = vpop.f32.mrb[0].mxu0
      %v1885 = vadd.f32 0.0, %v1884
      %v1886 = vpop.f32.mrb[0].mxu0
      %v1887 = vpop.f32.mrb[0].mxu0
      %v1888 = vadd.f32 0.0, %v1887
      %v1889 = vpop.f32.mrb[0].mxu0
      %1890 = vmatprep.mubr.bf16.mxu0 0
      %1891 = vmatmul.mubr.bf16.gmra.mrb[0].mxu0 %v1733
      %v1892 = vpop.f32.mrb[0].mxu0
      %v1893 = vadd.f32 0.0, %v1892
      %v1894 = vpop.f32.mrb[0].mxu0
      %v1895 = vpop.f32.mrb[0].mxu0
      %v1896 = vadd.f32 0.0, %v1895
      %v1897 = vpop.f32.mrb[0].mxu0
      %1898 = vdwg.mxu0
      %v1899 = vadd.f32 %v1604, %v1773
      %v1900 = vadd.f32 %v1605, %v1776
      %v1901 = vadd.f32 %v1606, %v1781
      %v1902 = vadd.f32 %v1607, %v1784
      %v1903 = vadd.f32 %v1608, %v1789
      %v1904 = vadd.f32 %v1609, %v1792
      %v1905 = vadd.f32 %v1610, %v1797
      %v1906 = vadd.f32 %v1611, %v1800
      %v1907 = vadd.f32 %v1612, %v1805
      %v1908 = vadd.f32 %v1613, %v1808
      %v1909 = vadd.f32 %v1614, %v1813
      %v1910 = vadd.f32 %v1615, %v1816
      %v1911 = vadd.f32 %v1616, %v1821
      %v1912 = vadd.f32 %v1617, %v1824
      %v1913 = vadd.f32 %v1618, %v1829
      %v1914 = vadd.f32 %v1619, %v1832
      %v1915 = vadd.f32 %v1620, %v1837
      %v1916 = vadd.f32 %v1621, %v1840
      %v1917 = vadd.f32 %v1622, %v1845
      %v1918 = vadd.f32 %v1623, %v1848
      %v1919 = vadd.f32 %v1624, %v1853
      %v1920 = vadd.f32 %v1625, %v1856
      %v1921 = vadd.f32 %v1626, %v1861
      %v1922 = vadd.f32 %v1627, %v1864
      %v1923 = vadd.f32 %v1628, %v1869
      %v1924 = vadd.f32 %v1629, %v1872
      %v1925 = vadd.f32 %v1630, %v1877
      %v1926 = vadd.f32 %v1631, %v1880
      %v1927 = vadd.f32 %v1632, %v1885
      %v1928 = vadd.f32 %v1633, %v1888
      %v1929 = vadd.f32 %v1634, %v1893
      %v1930 = vadd.f32 %v1635, %v1896
      %s1931 = scalar_lea.vmem %s206, 48
      %v1932 = vld [vmem:[%s1931] sm:$0xff]
      %v1933 = vld [vmem:[%s1931 + $0x8] sm:$0xff]
      %v1934 = vld [vmem:[%s1931 + $0x18] sm:$0xff]
      %v1935 = vld [vmem:[%s1931 + $0x20] sm:$0xff]
      %v1936 = vld [vmem:[%s1931 + $0x30] sm:$0xff]
      %v1937 = vld [vmem:[%s1931 + $0x38] sm:$0xff]
      %v1938 = vld [vmem:[%s1931 + $0x48] sm:$0xff]
      %v1939 = vld [vmem:[%s1931 + $0x50] sm:$0xff]
      %v1940 = vld [vmem:[%s1931 + $0x60] sm:$0xff]
      %v1941 = vld [vmem:[%s1931 + $0x68] sm:$0xff]
      %v1942 = vld [vmem:[%s1931 + $0x78] sm:$0xff]
      %v1943 = vld [vmem:[%s1931 + $0x80] sm:$0xff]
      %v1944 = vld [vmem:[%s1931 + $0x90] sm:$0xff]
      %v1945 = vld [vmem:[%s1931 + $0x98] sm:$0xff]
      %v1946 = vld [vmem:[%s1931 + $0xa8] sm:$0xff]
      %v1947 = vld [vmem:[%s1931 + $0xb0] sm:$0xff]
      %v1948 = vld [vmem:[%s1931 + $0xc0] sm:$0xff]
      %v1949 = vld [vmem:[%s1931 + $0xc8] sm:$0xff]
      %v1950 = vld [vmem:[%s1931 + $0xd8] sm:$0xff]
      %v1951 = vld [vmem:[%s1931 + $0xe0] sm:$0xff]
      %v1952 = vld [vmem:[%s1931 + $0xf0] sm:$0xff]
      %v1953 = vld [vmem:[%s1931 + $0xf8] sm:$0xff]
      %v1954 = vld [vmem:[%s1931 + $0x108] sm:$0xff]
      %v1955 = vld [vmem:[%s1931 + $0x110] sm:$0xff]
      %v1956 = vld [vmem:[%s1931 + $0x120] sm:$0xff]
      %v1957 = vld [vmem:[%s1931 + $0x128] sm:$0xff]
      %v1958 = vld [vmem:[%s1931 + $0x138] sm:$0xff]
      %v1959 = vld [vmem:[%s1931 + $0x140] sm:$0xff]
      %v1960 = vld [vmem:[%s1931 + $0x150] sm:$0xff]
      %v1961 = vld [vmem:[%s1931 + $0x158] sm:$0xff]
      %v1962 = vld [vmem:[%s1931 + $0x168] sm:$0xff]
      %v1963 = vld [vmem:[%s1931 + $0x170] sm:$0xff]
      %v1964 = vpack.c.bf16 %v1933, %v1932
      %v1965 = vpack.c.bf16 %v1935, %v1934
      %v1966 = vpack.c.bf16 %v1937, %v1936
      %v1967 = vpack.c.bf16 %v1939, %v1938
      %v1968 = vpack.c.bf16 %v1941, %v1940
      %v1969 = vpack.c.bf16 %v1943, %v1942
      %v1970 = vpack.c.bf16 %v1945, %v1944
      %v1971 = vpack.c.bf16 %v1947, %v1946
      %v1972 = vpack.c.bf16 %v1949, %v1948
      %v1973 = vpack.c.bf16 %v1951, %v1950
      %v1974 = vpack.c.bf16 %v1953, %v1952
      %v1975 = vpack.c.bf16 %v1955, %v1954
      %v1976 = vpack.c.bf16 %v1957, %v1956
      %v1977 = vpack.c.bf16 %v1959, %v1958
      %v1978 = vpack.c.bf16 %v1961, %v1960
      %v1979 = vpack.c.bf16 %v1963, %v1962
      %s1980 = scalar_lea.vmem %s210, 24
      %v1981 = vld [vmem:[%s1980] sm:$0xf]
      %v1982 = vpack.c.bf16 %v1981, %v1981
      %v1984 = vsel %vm324, %v1964, 0
      %v1987 = vsel %vm324, %v1965, 0
      %v1990 = vsel %vm324, %v1966, 0
      %v1993 = vsel %vm324, %v1967, 0
      %v1996 = vsel %vm324, %v1968, 0
      %v1999 = vsel %vm324, %v1969, 0
      %v2002 = vsel %vm324, %v1970, 0
      %v2005 = vsel %vm324, %v1971, 0
      %v2008 = vsel %vm324, %v1972, 0
      %v2011 = vsel %vm324, %v1973, 0
      %v2014 = vsel %vm324, %v1974, 0
      %v2017 = vsel %vm324, %v1975, 0
      %v2020 = vsel %vm324, %v1976, 0
      %v2023 = vsel %vm324, %v1977, 0
      %v2026 = vsel %vm324, %v1978, 0
      %v2029 = vsel %vm324, %v1979, 0
      %v2032 = vsel %vm373, %v1982, 0
      %2034 = vmatprep.subr.bf16.mxu0 0
      %2035 = vmatpush1.bf16.msra.mxu0 %v2032
      %2036 = vmatprep.subr.bf16.mxu0 0
      %2037 = vmatpush1.bf16.msra.mxu0 0
      %2038 = vmatprep.subr.bf16.mxu0 0
      %2039 = vmatpush1.bf16.msra.mxu0 0
      %2040 = vmatprep.subr.bf16.mxu0 0
      %2041 = vmatpush1.bf16.msra.mxu0 0
      %2042 = vmatprep.subr.bf16.mxu0 0
      %2043 = vmatpush1.bf16.msra.mxu0 0
      %2044 = vmatprep.subr.bf16.mxu0 0
      %2045 = vmatpush1.bf16.msra.mxu0 0
      %2046 = vmatprep.subr.bf16.mxu0 0
      %2047 = vmatpush1.bf16.msra.mxu0 0
      %2048 = vmatprep.subr.bf16.mxu0 0
      %2049 = vmatpush1.bf16.msra.mxu0 0
      %2050 = vmatprep.subr.bf16.mxu0 0
      %2051 = vmatpush1.bf16.msra.mxu0 0
      %2052 = vmatprep.subr.bf16.mxu0 0
      %2053 = vmatpush1.bf16.msra.mxu0 0
      %2054 = vmatprep.subr.bf16.mxu0 0
      %2055 = vmatpush1.bf16.msra.mxu0 0
      %2056 = vmatprep.subr.bf16.mxu0 0
      %2057 = vmatpush1.bf16.msra.mxu0 0
      %2058 = vmatprep.subr.bf16.mxu0 0
      %2059 = vmatpush1.bf16.msra.mxu0 0
      %2060 = vmatprep.subr.bf16.mxu0 0
      %2061 = vmatpush1.bf16.msra.mxu0 0
      %2062 = vmatprep.subr.bf16.mxu0 0
      %2063 = vmatpush1.bf16.msra.mxu0 0
      %2064 = vmatprep.subr.bf16.mxu0 0
      %2065 = vmatpush1.bf16.msra.mxu0 0
      %2066 = vmatprep.mubr.bf16.mxu0 0
      %2067 = vmatmul.mubr.bf16.gmra.mrb[0].mxu0 %v1984
      %v2068 = vpop.f32.mrb[0].mxu0
      %v2069 = vadd.f32 0.0, %v2068
      %v2070 = vpop.f32.mrb[0].mxu0
      %v2071 = vpop.f32.mrb[0].mxu0
      %v2072 = vadd.f32 0.0, %v2071
      %v2073 = vpop.f32.mrb[0].mxu0
      %2074 = vmatprep.mubr.bf16.mxu0 0
      %2075 = vmatmul.mubr.bf16.gmra.mrb[0].mxu0 %v1987
      %v2076 = vpop.f32.mrb[0].mxu0
      %v2077 = vadd.f32 0.0, %v2076
      %v2078 = vpop.f32.mrb[0].mxu0
      %v2079 = vpop.f32.mrb[0].mxu0
      %v2080 = vadd.f32 0.0, %v2079
      %v2081 = vpop.f32.mrb[0].mxu0
      %2082 = vmatprep.mubr.bf16.mxu0 0
      %2083 = vmatmul.mubr.bf16.gmra.mrb[0].mxu0 %v1990
      %v2084 = vpop.f32.mrb[0].mxu0
      %v2085 = vadd.f32 0.0, %v2084
      %v2086 = vpop.f32.mrb[0].mxu0
      %v2087 = vpop.f32.mrb[0].mxu0
      %v2088 = vadd.f32 0.0, %v2087
      %v2089 = vpop.f32.mrb[0].mxu0
      %2090 = vmatprep.mubr.bf16.mxu0 0
      %2091 = vmatmul.mubr.bf16.gmra.mrb[0].mxu0 %v1993
      %v2092 = vpop.f32.mrb[0].mxu0
      %v2093 = vadd.f32 0.0, %v2092
      %v2094 = vpop.f32.mrb[0].mxu0
      %v2095 = vpop.f32.mrb[0].mxu0
      %v2096 = vadd.f32 0.0, %v2095
      %v2097 = vpop.f32.mrb[0].mxu0
      %2098 = vmatprep.mubr.bf16.mxu0 0
      %2099 = vmatmul.mubr.bf16.gmra.mrb[0].mxu0 %v1996
      %v2100 = vpop.f32.mrb[0].mxu0
      %v2101 = vadd.f32 0.0, %v2100
      %v2102 = vpop.f32.mrb[0].mxu0
      %v2103 = vpop.f32.mrb[0].mxu0
      %v2104 = vadd.f32 0.0, %v2103
      %v2105 = vpop.f32.mrb[0].mxu0
      %2106 = vmatprep.mubr.bf16.mxu0 0
      %2107 = vmatmul.mubr.bf16.gmra.mrb[0].mxu0 %v1999
      %v2108 = vpop.f32.mrb[0].mxu0
      %v2109 = vadd.f32 0.0, %v2108
      %v2110 = vpop.f32.mrb[0].mxu0
      %v2111 = vpop.f32.mrb[0].mxu0
      %v2112 = vadd.f32 0.0, %v2111
      %v2113 = vpop.f32.mrb[0].mxu0
      %2114 = vmatprep.mubr.bf16.mxu0 0
      %2115 = vmatmul.mubr.bf16.gmra.mrb[0].mxu0 %v2002
      %v2116 = vpop.f32.mrb[0].mxu0
      %v2117 = vadd.f32 0.0, %v2116
      %v2118 = vpop.f32.mrb[0].mxu0
      %v2119 = vpop.f32.mrb[0].mxu0
      %v2120 = vadd.f32 0.0, %v2119
      %v2121 = vpop.f32.mrb[0].mxu0
      %2122 = vmatprep.mubr.bf16.mxu0 0
      %2123 = vmatmul.mubr.bf16.gmra.mrb[0].mxu0 %v2005
      %v2124 = vpop.f32.mrb[0].mxu0
      %v2125 = vadd.f32 0.0, %v2124
      %v2126 = vpop.f32.mrb[0].mxu0
      %v2127 = vpop.f32.mrb[0].mxu0
      %v2128 = vadd.f32 0.0, %v2127
      %v2129 = vpop.f32.mrb[0].mxu0
      %2130 = vmatprep.mubr.bf16.mxu0 0
      %2131 = vmatmul.mubr.bf16.gmra.mrb[0].mxu0 %v2008
      %v2132 = vpop.f32.mrb[0].mxu0
      %v2133 = vadd.f32 0.0, %v2132
      %v2134 = vpop.f32.mrb[0].mxu0
      %v2135 = vpop.f32.mrb[0].mxu0
      %v2136 = vadd.f32 0.0, %v2135
      %v2137 = vpop.f32.mrb[0].mxu0
      %2138 = vmatprep.mubr.bf16.mxu0 0
      %2139 = vmatmul.mubr.bf16.gmra.mrb[0].mxu0 %v2011
      %v2140 = vpop.f32.mrb[0].mxu0
      %v2141 = vadd.f32 0.0, %v2140
      %v2142 = vpop.f32.mrb[0].mxu0
      %v2143 = vpop.f32.mrb[0].mxu0
      %v2144 = vadd.f32 0.0, %v2143
      %v2145 = vpop.f32.mrb[0].mxu0
      %2146 = vmatprep.mubr.bf16.mxu0 0
      %2147 = vmatmul.mubr.bf16.gmra.mrb[0].mxu0 %v2014
      %v2148 = vpop.f32.mrb[0].mxu0
      %v2149 = vadd.f32 0.0, %v2148
      %v2150 = vpop.f32.mrb[0].mxu0
      %v2151 = vpop.f32.mrb[0].mxu0
      %v2152 = vadd.f32 0.0, %v2151
      %v2153 = vpop.f32.mrb[0].mxu0
      %2154 = vmatprep.mubr.bf16.mxu0 0
      %2155 = vmatmul.mubr.bf16.gmra.mrb[0].mxu0 %v2017
      %v2156 = vpop.f32.mrb[0].mxu0
      %v2157 = vadd.f32 0.0, %v2156
      %v2158 = vpop.f32.mrb[0].mxu0
      %v2159 = vpop.f32.mrb[0].mxu0
      %v2160 = vadd.f32 0.0, %v2159
      %v2161 = vpop.f32.mrb[0].mxu0
      %2162 = vmatprep.mubr.bf16.mxu0 0
      %2163 = vmatmul.mubr.bf16.gmra.mrb[0].mxu0 %v2020
      %v2164 = vpop.f32.mrb[0].mxu0
      %v2165 = vadd.f32 0.0, %v2164
      %v2166 = vpop.f32.mrb[0].mxu0
      %v2167 = vpop.f32.mrb[0].mxu0
      %v2168 = vadd.f32 0.0, %v2167
      %v2169 = vpop.f32.mrb[0].mxu0
      %2170 = vmatprep.mubr.bf16.mxu0 0
      %2171 = vmatmul.mubr.bf16.gmra.mrb[0].mxu0 %v2023
      %v2172 = vpop.f32.mrb[0].mxu0
      %v2173 = vadd.f32 0.0, %v2172
      %v2174 = vpop.f32.mrb[0].mxu0
      %v2175 = vpop.f32.mrb[0].mxu0
      %v2176 = vadd.f32 0.0, %v2175
      %v2177 = vpop.f32.mrb[0].mxu0
      %2178 = vmatprep.mubr.bf16.mxu0 0
      %2179 = vmatmul.mubr.bf16.gmra.mrb[0].mxu0 %v2026
      %v2180 = vpop.f32.mrb[0].mxu0
      %v2181 = vadd.f32 0.0, %v2180
      %v2182 = vpop.f32.mrb[0].mxu0
      %v2183 = vpop.f32.mrb[0].mxu0
      %v2184 = vadd.f32 0.0, %v2183
      %v2185 = vpop.f32.mrb[0].mxu0
      %2186 = vmatprep.mubr.bf16.mxu0 0
      %2187 = vmatmul.mubr.bf16.gmra.mrb[0].mxu0 %v2029
      %v2188 = vpop.f32.mrb[0].mxu0
      %v2189 = vadd.f32 0.0, %v2188
      %v2190 = vpop.f32.mrb[0].mxu0
      %v2191 = vpop.f32.mrb[0].mxu0
      %v2192 = vadd.f32 0.0, %v2191
      %v2193 = vpop.f32.mrb[0].mxu0
      %2194 = vdwg.mxu0
      %v2195 = vadd.f32 %v1899, %v2069
      %v2196 = vadd.f32 %v1900, %v2072
      %v2197 = vadd.f32 %v1901, %v2077
      %v2198 = vadd.f32 %v1902, %v2080
      %v2199 = vadd.f32 %v1903, %v2085
      %v2200 = vadd.f32 %v1904, %v2088
      %v2201 = vadd.f32 %v1905, %v2093
      %v2202 = vadd.f32 %v1906, %v2096
      %v2203 = vadd.f32 %v1907, %v2101
      %v2204 = vadd.f32 %v1908, %v2104
      %v2205 = vadd.f32 %v1909, %v2109
      %v2206 = vadd.f32 %v1910, %v2112
      %v2207 = vadd.f32 %v1911, %v2117
      %v2208 = vadd.f32 %v1912, %v2120
      %v2209 = vadd.f32 %v1913, %v2125
      %v2210 = vadd.f32 %v1914, %v2128
      %v2211 = vadd.f32 %v1915, %v2133
      %v2212 = vadd.f32 %v1916, %v2136
      %v2213 = vadd.f32 %v1917, %v2141
      %v2214 = vadd.f32 %v1918, %v2144
      %v2215 = vadd.f32 %v1919, %v2149
      %v2216 = vadd.f32 %v1920, %v2152
      %v2217 = vadd.f32 %v1921, %v2157
      %v2218 = vadd.f32 %v1922, %v2160
      %v2219 = vadd.f32 %v1923, %v2165
      %v2220 = vadd.f32 %v1924, %v2168
      %v2221 = vadd.f32 %v1925, %v2173
      %v2222 = vadd.f32 %v1926, %v2176
      %v2223 = vadd.f32 %v1927, %v2181
      %v2224 = vadd.f32 %v1928, %v2184
      %v2225 = vadd.f32 %v1929, %v2189
      %v2226 = vadd.f32 %v1930, %v2192
      %v2227 = vld [vmem:[%s1931 + $0x1] sm:$0xff]
      %v2228 = vld [vmem:[%s1931 + $0x9] sm:$0xff]
      %v2229 = vld [vmem:[%s1931 + $0x19] sm:$0xff]
      %v2230 = vld [vmem:[%s1931 + $0x21] sm:$0xff]
      %v2231 = vld [vmem:[%s1931 + $0x31] sm:$0xff]
      %v2232 = vld [vmem:[%s1931 + $0x39] sm:$0xff]
      %v2233 = vld [vmem:[%s1931 + $0x49] sm:$0xff]
      %v2234 = vld [vmem:[%s1931 + $0x51] sm:$0xff]
      %v2235 = vld [vmem:[%s1931 + $0x61] sm:$0xff]
      %v2236 = vld [vmem:[%s1931 + $0x69] sm:$0xff]
      %v2237 = vld [vmem:[%s1931 + $0x79] sm:$0xff]
      %v2238 = vld [vmem:[%s1931 + $0x81] sm:$0xff]
      %v2239 = vld [vmem:[%s1931 + $0x91] sm:$0xff]
      %v2240 = vld [vmem:[%s1931 + $0x99] sm:$0xff]
      %v2241 = vld [vmem:[%s1931 + $0xa9] sm:$0xff]
      %v2242 = vld [vmem:[%s1931 + $0xb1] sm:$0xff]
      %v2243 = vld [vmem:[%s1931 + $0xc1] sm:$0xff]
      %v2244 = vld [vmem:[%s1931 + $0xc9] sm:$0xff]
      %v2245 = vld [vmem:[%s1931 + $0xd9] sm:$0xff]
      %v2246 = vld [vmem:[%s1931 + $0xe1] sm:$0xff]
      %v2247 = vld [vmem:[%s1931 + $0xf1] sm:$0xff]
      %v2248 = vld [vmem:[%s1931 + $0xf9] sm:$0xff]
      %v2249 = vld [vmem:[%s1931 + $0x109] sm:$0xff]
      %v2250 = vld [vmem:[%s1931 + $0x111] sm:$0xff]
      %v2251 = vld [vmem:[%s1931 + $0x121] sm:$0xff]
      %v2252 = vld [vmem:[%s1931 + $0x129] sm:$0xff]
      %v2253 = vld [vmem:[%s1931 + $0x139] sm:$0xff]
      %v2254 = vld [vmem:[%s1931 + $0x141] sm:$0xff]
      %v2255 = vld [vmem:[%s1931 + $0x151] sm:$0xff]
      %v2256 = vld [vmem:[%s1931 + $0x159] sm:$0xff]
      %v2257 = vld [vmem:[%s1931 + $0x169] sm:$0xff]
      %v2258 = vld [vmem:[%s1931 + $0x171] sm:$0xff]
      %v2259 = vpack.c.bf16 %v2228, %v2227
      %v2260 = vpack.c.bf16 %v2230, %v2229
      %v2261 = vpack.c.bf16 %v2232, %v2231
      %v2262 = vpack.c.bf16 %v2234, %v2233
      %v2263 = vpack.c.bf16 %v2236, %v2235
      %v2264 = vpack.c.bf16 %v2238, %v2237
      %v2265 = vpack.c.bf16 %v2240, %v2239
      %v2266 = vpack.c.bf16 %v2242, %v2241
      %v2267 = vpack.c.bf16 %v2244, %v2243
      %v2268 = vpack.c.bf16 %v2246, %v2245
      %v2269 = vpack.c.bf16 %v2248, %v2247
      %v2270 = vpack.c.bf16 %v2250, %v2249
      %v2271 = vpack.c.bf16 %v2252, %v2251
      %v2272 = vpack.c.bf16 %v2254, %v2253
      %v2273 = vpack.c.bf16 %v2256, %v2255
      %v2274 = vpack.c.bf16 %v2258, %v2257
      %s2275 = scalar_lea.vmem %s210, 28
      %v2276 = vld [vmem:[%s2275] sm:$0xf]
      %v2277 = vpack.c.bf16 %v2276, %v2276
      %v2279 = vsel %vm324, %v2259, 0
      %v2282 = vsel %vm324, %v2260, 0
      %v2285 = vsel %vm324, %v2261, 0
      %v2288 = vsel %vm324, %v2262, 0
      %v2291 = vsel %vm324, %v2263, 0
      %v2294 = vsel %vm324, %v2264, 0
      %v2297 = vsel %vm324, %v2265, 0
      %v2300 = vsel %vm324, %v2266, 0
      %v2303 = vsel %vm324, %v2267, 0
      %v2306 = vsel %vm324, %v2268, 0
      %v2309 = vsel %vm324, %v2269, 0
      %v2312 = vsel %vm324, %v2270, 0
      %v2315 = vsel %vm324, %v2271, 0
      %v2318 = vsel %vm324, %v2272, 0
      %v2321 = vsel %vm324, %v2273, 0
      %v2324 = vsel %vm324, %v2274, 0
      %v2327 = vsel %vm373, %v2277, 0
      %2329 = vmatprep.subr.bf16.mxu0 0
      %2330 = vmatpush1.bf16.msra.mxu0 %v2327
      %2331 = vmatprep.subr.bf16.mxu0 0
      %2332 = vmatpush1.bf16.msra.mxu0 0
      %2333 = vmatprep.subr.bf16.mxu0 0
      %2334 = vmatpush1.bf16.msra.mxu0 0
      %2335 = vmatprep.subr.bf16.mxu0 0
      %2336 = vmatpush1.bf16.msra.mxu0 0
      %2337 = vmatprep.subr.bf16.mxu0 0
      %2338 = vmatpush1.bf16.msra.mxu0 0
      %2339 = vmatprep.subr.bf16.mxu0 0
      %2340 = vmatpush1.bf16.msra.mxu0 0
      %2341 = vmatprep.subr.bf16.mxu0 0
      %2342 = vmatpush1.bf16.msra.mxu0 0
      %2343 = vmatprep.subr.bf16.mxu0 0
      %2344 = vmatpush1.bf16.msra.mxu0 0
      %2345 = vmatprep.subr.bf16.mxu0 0
      %2346 = vmatpush1.bf16.msra.mxu0 0
      %2347 = vmatprep.subr.bf16.mxu0 0
      %2348 = vmatpush1.bf16.msra.mxu0 0
      %2349 = vmatprep.subr.bf16.mxu0 0
      %2350 = vmatpush1.bf16.msra.mxu0 0
      %2351 = vmatprep.subr.bf16.mxu0 0
      %2352 = vmatpush1.bf16.msra.mxu0 0
      %2353 = vmatprep.subr.bf16.mxu0 0
      %2354 = vmatpush1.bf16.msra.mxu0 0
      %2355 = vmatprep.subr.bf16.mxu0 0
      %2356 = vmatpush1.bf16.msra.mxu0 0
      %2357 = vmatprep.subr.bf16.mxu0 0
      %2358 = vmatpush1.bf16.msra.mxu0 0
      %2359 = vmatprep.subr.bf16.mxu0 0
      %2360 = vmatpush1.bf16.msra.mxu0 0
      %2361 = vmatprep.mubr.bf16.mxu0 0
      %2362 = vmatmul.mubr.bf16.gmra.mrb[0].mxu0 %v2279
      %v2363 = vpop.f32.mrb[0].mxu0
      %v2364 = vadd.f32 0.0, %v2363
      %v2365 = vpop.f32.mrb[0].mxu0
      %v2366 = vpop.f32.mrb[0].mxu0
      %v2367 = vadd.f32 0.0, %v2366
      %v2368 = vpop.f32.mrb[0].mxu0
      %2369 = vmatprep.mubr.bf16.mxu0 0
      %2370 = vmatmul.mubr.bf16.gmra.mrb[0].mxu0 %v2282
      %v2371 = vpop.f32.mrb[0].mxu0
      %v2372 = vadd.f32 0.0, %v2371
      %v2373 = vpop.f32.mrb[0].mxu0
      %v2374 = vpop.f32.mrb[0].mxu0
      %v2375 = vadd.f32 0.0, %v2374
      %v2376 = vpop.f32.mrb[0].mxu0
      %2377 = vmatprep.mubr.bf16.mxu0 0
      %2378 = vmatmul.mubr.bf16.gmra.mrb[0].mxu0 %v2285
      %v2379 = vpop.f32.mrb[0].mxu0
      %v2380 = vadd.f32 0.0, %v2379
      %v2381 = vpop.f32.mrb[0].mxu0
      %v2382 = vpop.f32.mrb[0].mxu0
      %v2383 = vadd.f32 0.0, %v2382
      %v2384 = vpop.f32.mrb[0].mxu0
      %2385 = vmatprep.mubr.bf16.mxu0 0
      %2386 = vmatmul.mubr.bf16.gmra.mrb[0].mxu0 %v2288
      %v2387 = vpop.f32.mrb[0].mxu0
      %v2388 = vadd.f32 0.0, %v2387
      %v2389 = vpop.f32.mrb[0].mxu0
      %v2390 = vpop.f32.mrb[0].mxu0
      %v2391 = vadd.f32 0.0, %v2390
      %v2392 = vpop.f32.mrb[0].mxu0
      %2393 = vmatprep.mubr.bf16.mxu0 0
      %2394 = vmatmul.mubr.bf16.gmra.mrb[0].mxu0 %v2291
      %v2395 = vpop.f32.mrb[0].mxu0
      %v2396 = vadd.f32 0.0, %v2395
      %v2397 = vpop.f32.mrb[0].mxu0
      %v2398 = vpop.f32.mrb[0].mxu0
      %v2399 = vadd.f32 0.0, %v2398
      %v2400 = vpop.f32.mrb[0].mxu0
      %2401 = vmatprep.mubr.bf16.mxu0 0
      %2402 = vmatmul.mubr.bf16.gmra.mrb[0].mxu0 %v2294
      %v2403 = vpop.f32.mrb[0].mxu0
      %v2404 = vadd.f32 0.0, %v2403
      %v2405 = vpop.f32.mrb[0].mxu0
      %v2406 = vpop.f32.mrb[0].mxu0
      %v2407 = vadd.f32 0.0, %v2406
      %v2408 = vpop.f32.mrb[0].mxu0
      %2409 = vmatprep.mubr.bf16.mxu0 0
      %2410 = vmatmul.mubr.bf16.gmra.mrb[0].mxu0 %v2297
      %v2411 = vpop.f32.mrb[0].mxu0
      %v2412 = vadd.f32 0.0, %v2411
      %v2413 = vpop.f32.mrb[0].mxu0
      %v2414 = vpop.f32.mrb[0].mxu0
      %v2415 = vadd.f32 0.0, %v2414
      %v2416 = vpop.f32.mrb[0].mxu0
      %2417 = vmatprep.mubr.bf16.mxu0 0
      %2418 = vmatmul.mubr.bf16.gmra.mrb[0].mxu0 %v2300
      %v2419 = vpop.f32.mrb[0].mxu0
      %v2420 = vadd.f32 0.0, %v2419
      %v2421 = vpop.f32.mrb[0].mxu0
      %v2422 = vpop.f32.mrb[0].mxu0
      %v2423 = vadd.f32 0.0, %v2422
      %v2424 = vpop.f32.mrb[0].mxu0
      %2425 = vmatprep.mubr.bf16.mxu0 0
      %2426 = vmatmul.mubr.bf16.gmra.mrb[0].mxu0 %v2303
      %v2427 = vpop.f32.mrb[0].mxu0
      %v2428 = vadd.f32 0.0, %v2427
      %v2429 = vpop.f32.mrb[0].mxu0
      %v2430 = vpop.f32.mrb[0].mxu0
      %v2431 = vadd.f32 0.0, %v2430
      %v2432 = vpop.f32.mrb[0].mxu0
      %2433 = vmatprep.mubr.bf16.mxu0 0
      %2434 = vmatmul.mubr.bf16.gmra.mrb[0].mxu0 %v2306
      %v2435 = vpop.f32.mrb[0].mxu0
      %v2436 = vadd.f32 0.0, %v2435
      %v2437 = vpop.f32.mrb[0].mxu0
      %v2438 = vpop.f32.mrb[0].mxu0
      %v2439 = vadd.f32 0.0, %v2438
      %v2440 = vpop.f32.mrb[0].mxu0
      %2441 = vmatprep.mubr.bf16.mxu0 0
      %2442 = vmatmul.mubr.bf16.gmra.mrb[0].mxu0 %v2309
      %v2443 = vpop.f32.mrb[0].mxu0
      %v2444 = vadd.f32 0.0, %v2443
      %v2445 = vpop.f32.mrb[0].mxu0
      %v2446 = vpop.f32.mrb[0].mxu0
      %v2447 = vadd.f32 0.0, %v2446
      %v2448 = vpop.f32.mrb[0].mxu0
      %2449 = vmatprep.mubr.bf16.mxu0 0
      %2450 = vmatmul.mubr.bf16.gmra.mrb[0].mxu0 %v2312
      %v2451 = vpop.f32.mrb[0].mxu0
      %v2452 = vadd.f32 0.0, %v2451
      %v2453 = vpop.f32.mrb[0].mxu0
      %v2454 = vpop.f32.mrb[0].mxu0
      %v2455 = vadd.f32 0.0, %v2454
      %v2456 = vpop.f32.mrb[0].mxu0
      %2457 = vmatprep.mubr.bf16.mxu0 0
      %2458 = vmatmul.mubr.bf16.gmra.mrb[0].mxu0 %v2315
      %v2459 = vpop.f32.mrb[0].mxu0
      %v2460 = vadd.f32 0.0, %v2459
      %v2461 = vpop.f32.mrb[0].mxu0
      %v2462 = vpop.f32.mrb[0].mxu0
      %v2463 = vadd.f32 0.0, %v2462
      %v2464 = vpop.f32.mrb[0].mxu0
      %2465 = vmatprep.mubr.bf16.mxu0 0
      %2466 = vmatmul.mubr.bf16.gmra.mrb[0].mxu0 %v2318
      %v2467 = vpop.f32.mrb[0].mxu0
      %v2468 = vadd.f32 0.0, %v2467
      %v2469 = vpop.f32.mrb[0].mxu0
      %v2470 = vpop.f32.mrb[0].mxu0
      %v2471 = vadd.f32 0.0, %v2470
      %v2472 = vpop.f32.mrb[0].mxu0
      %2473 = vmatprep.mubr.bf16.mxu0 0
      %2474 = vmatmul.mubr.bf16.gmra.mrb[0].mxu0 %v2321
      %v2475 = vpop.f32.mrb[0].mxu0
      %v2476 = vadd.f32 0.0, %v2475
      %v2477 = vpop.f32.mrb[0].mxu0
      %v2478 = vpop.f32.mrb[0].mxu0
      %v2479 = vadd.f32 0.0, %v2478
      %v2480 = vpop.f32.mrb[0].mxu0
      %2481 = vmatprep.mubr.bf16.mxu0 0
      %2482 = vmatmul.mubr.bf16.gmra.mrb[0].mxu0 %v2324
      %v2483 = vpop.f32.mrb[0].mxu0
      %v2484 = vadd.f32 0.0, %v2483
      %v2485 = vpop.f32.mrb[0].mxu0
      %v2486 = vpop.f32.mrb[0].mxu0
      %v2487 = vadd.f32 0.0, %v2486
      %v2488 = vpop.f32.mrb[0].mxu0
      %2489 = vdwg.mxu0
      %v2490 = vadd.f32 %v2195, %v2364
      %v2491 = vadd.f32 %v2196, %v2367
      %v2492 = vadd.f32 %v2197, %v2372
      %v2493 = vadd.f32 %v2198, %v2375
      %v2494 = vadd.f32 %v2199, %v2380
      %v2495 = vadd.f32 %v2200, %v2383
      %v2496 = vadd.f32 %v2201, %v2388
      %v2497 = vadd.f32 %v2202, %v2391
      %v2498 = vadd.f32 %v2203, %v2396
      %v2499 = vadd.f32 %v2204, %v2399
      %v2500 = vadd.f32 %v2205, %v2404
      %v2501 = vadd.f32 %v2206, %v2407
      %v2502 = vadd.f32 %v2207, %v2412
      %v2503 = vadd.f32 %v2208, %v2415
      %v2504 = vadd.f32 %v2209, %v2420
      %v2505 = vadd.f32 %v2210, %v2423
      %v2506 = vadd.f32 %v2211, %v2428
      %v2507 = vadd.f32 %v2212, %v2431
      %v2508 = vadd.f32 %v2213, %v2436
      %v2509 = vadd.f32 %v2214, %v2439
      %v2510 = vadd.f32 %v2215, %v2444
      %v2511 = vadd.f32 %v2216, %v2447
      %v2512 = vadd.f32 %v2217, %v2452
      %v2513 = vadd.f32 %v2218, %v2455
      %v2514 = vadd.f32 %v2219, %v2460
      %v2515 = vadd.f32 %v2220, %v2463
      %v2516 = vadd.f32 %v2221, %v2468
      %v2517 = vadd.f32 %v2222, %v2471
      %v2518 = vadd.f32 %v2223, %v2476
      %v2519 = vadd.f32 %v2224, %v2479
      %v2520 = vadd.f32 %v2225, %v2484
      %v2521 = vadd.f32 %v2226, %v2487
      %v2522 = vld [vmem:[%s1931 + $0x2] sm:$0xff]
      %v2523 = vld [vmem:[%s1931 + $0xa] sm:$0xff]
      %v2524 = vld [vmem:[%s1931 + $0x1a] sm:$0xff]
      %v2525 = vld [vmem:[%s1931 + $0x22] sm:$0xff]
      %v2526 = vld [vmem:[%s1931 + $0x32] sm:$0xff]
      %v2527 = vld [vmem:[%s1931 + $0x3a] sm:$0xff]
      %v2528 = vld [vmem:[%s1931 + $0x4a] sm:$0xff]
      %v2529 = vld [vmem:[%s1931 + $0x52] sm:$0xff]
      %v2530 = vld [vmem:[%s1931 + $0x62] sm:$0xff]
      %v2531 = vld [vmem:[%s1931 + $0x6a] sm:$0xff]
      %v2532 = vld [vmem:[%s1931 + $0x7a] sm:$0xff]
      %v2533 = vld [vmem:[%s1931 + $0x82] sm:$0xff]
      %v2534 = vld [vmem:[%s1931 + $0x92] sm:$0xff]
      %v2535 = vld [vmem:[%s1931 + $0x9a] sm:$0xff]
      %v2536 = vld [vmem:[%s1931 + $0xaa] sm:$0xff]
      %v2537 = vld [vmem:[%s1931 + $0xb2] sm:$0xff]
      %v2538 = vld [vmem:[%s1931 + $0xc2] sm:$0xff]
      %v2539 = vld [vmem:[%s1931 + $0xca] sm:$0xff]
      %v2540 = vld [vmem:[%s1931 + $0xda] sm:$0xff]
      %v2541 = vld [vmem:[%s1931 + $0xe2] sm:$0xff]
      %v2542 = vld [vmem:[%s1931 + $0xf2] sm:$0xff]
      %v2543 = vld [vmem:[%s1931 + $0xfa] sm:$0xff]
      %v2544 = vld [vmem:[%s1931 + $0x10a] sm:$0xff]
      %v2545 = vld [vmem:[%s1931 + $0x112] sm:$0xff]
      %v2546 = vld [vmem:[%s1931 + $0x122] sm:$0xff]
      %v2547 = vld [vmem:[%s1931 + $0x12a] sm:$0xff]
      %v2548 = vld [vmem:[%s1931 + $0x13a] sm:$0xff]
      %v2549 = vld [vmem:[%s1931 + $0x142] sm:$0xff]
      %v2550 = vld [vmem:[%s1931 + $0x152] sm:$0xff]
      %v2551 = vld [vmem:[%s1931 + $0x15a] sm:$0xff]
      %v2552 = vld [vmem:[%s1931 + $0x16a] sm:$0xff]
      %v2553 = vld [vmem:[%s1931 + $0x172] sm:$0xff]
      %v2554 = vpack.c.bf16 %v2523, %v2522
      %v2555 = vpack.c.bf16 %v2525, %v2524
      %v2556 = vpack.c.bf16 %v2527, %v2526
      %v2557 = vpack.c.bf16 %v2529, %v2528
      %v2558 = vpack.c.bf16 %v2531, %v2530
      %v2559 = vpack.c.bf16 %v2533, %v2532
      %v2560 = vpack.c.bf16 %v2535, %v2534
      %v2561 = vpack.c.bf16 %v2537, %v2536
      %v2562 = vpack.c.bf16 %v2539, %v2538
      %v2563 = vpack.c.bf16 %v2541, %v2540
      %v2564 = vpack.c.bf16 %v2543, %v2542
      %v2565 = vpack.c.bf16 %v2545, %v2544
      %v2566 = vpack.c.bf16 %v2547, %v2546
      %v2567 = vpack.c.bf16 %v2549, %v2548
      %v2568 = vpack.c.bf16 %v2551, %v2550
      %v2569 = vpack.c.bf16 %v2553, %v2552
      %s2570 = scalar_lea.vmem %s210, 32
      %v2571 = vld [vmem:[%s2570] sm:$0xf]
      %v2572 = vpack.c.bf16 %v2571, %v2571
      %v2574 = vsel %vm324, %v2554, 0
      %v2577 = vsel %vm324, %v2555, 0
      %v2580 = vsel %vm324, %v2556, 0
      %v2583 = vsel %vm324, %v2557, 0
      %v2586 = vsel %vm324, %v2558, 0
      %v2589 = vsel %vm324, %v2559, 0
      %v2592 = vsel %vm324, %v2560, 0
      %v2595 = vsel %vm324, %v2561, 0
      %v2598 = vsel %vm324, %v2562, 0
      %v2601 = vsel %vm324, %v2563, 0
      %v2604 = vsel %vm324, %v2564, 0
      %v2607 = vsel %vm324, %v2565, 0
      %v2610 = vsel %vm324, %v2566, 0
      %v2613 = vsel %vm324, %v2567, 0
      %v2616 = vsel %vm324, %v2568, 0
      %v2619 = vsel %vm324, %v2569, 0
      %v2622 = vsel %vm373, %v2572, 0
      %2624 = vmatprep.subr.bf16.mxu0 0
      %2625 = vmatpush1.bf16.msra.mxu0 %v2622
      %2626 = vmatprep.subr.bf16.mxu0 0
      %2627 = vmatpush1.bf16.msra.mxu0 0
      %2628 = vmatprep.subr.bf16.mxu0 0
      %2629 = vmatpush1.bf16.msra.mxu0 0
      %2630 = vmatprep.subr.bf16.mxu0 0
      %2631 = vmatpush1.bf16.msra.mxu0 0
      %2632 = vmatprep.subr.bf16.mxu0 0
      %2633 = vmatpush1.bf16.msra.mxu0 0
      %2634 = vmatprep.subr.bf16.mxu0 0
      %2635 = vmatpush1.bf16.msra.mxu0 0
      %2636 = vmatprep.subr.bf16.mxu0 0
      %2637 = vmatpush1.bf16.msra.mxu0 0
      %2638 = vmatprep.subr.bf16.mxu0 0
      %2639 = vmatpush1.bf16.msra.mxu0 0
      %2640 = vmatprep.subr.bf16.mxu0 0
      %2641 = vmatpush1.bf16.msra.mxu0 0
      %2642 = vmatprep.subr.bf16.mxu0 0
      %2643 = vmatpush1.bf16.msra.mxu0 0
      %2644 = vmatprep.subr.bf16.mxu0 0
      %2645 = vmatpush1.bf16.msra.mxu0 0
      %2646 = vmatprep.subr.bf16.mxu0 0
      %2647 = vmatpush1.bf16.msra.mxu0 0
      %2648 = vmatprep.subr.bf16.mxu0 0
      %2649 = vmatpush1.bf16.msra.mxu0 0
      %2650 = vmatprep.subr.bf16.mxu0 0
      %2651 = vmatpush1.bf16.msra.mxu0 0
      %2652 = vmatprep.subr.bf16.mxu0 0
      %2653 = vmatpush1.bf16.msra.mxu0 0
      %2654 = vmatprep.subr.bf16.mxu0 0
      %2655 = vmatpush1.bf16.msra.mxu0 0
      %2656 = vmatprep.mubr.bf16.mxu0 0
      %2657 = vmatmul.mubr.bf16.gmra.mrb[0].mxu0 %v2574
      %v2658 = vpop.f32.mrb[0].mxu0
      %v2659 = vadd.f32 0.0, %v2658
      %v2660 = vpop.f32.mrb[0].mxu0
      %v2661 = vpop.f32.mrb[0].mxu0
      %v2662 = vadd.f32 0.0, %v2661
      %v2663 = vpop.f32.mrb[0].mxu0
      %2664 = vmatprep.mubr.bf16.mxu0 0
      %2665 = vmatmul.mubr.bf16.gmra.mrb[0].mxu0 %v2577
      %v2666 = vpop.f32.mrb[0].mxu0
      %v2667 = vadd.f32 0.0, %v2666
      %v2668 = vpop.f32.mrb[0].mxu0
      %v2669 = vpop.f32.mrb[0].mxu0
      %v2670 = vadd.f32 0.0, %v2669
      %v2671 = vpop.f32.mrb[0].mxu0
      %2672 = vmatprep.mubr.bf16.mxu0 0
      %2673 = vmatmul.mubr.bf16.gmra.mrb[0].mxu0 %v2580
      %v2674 = vpop.f32.mrb[0].mxu0
      %v2675 = vadd.f32 0.0, %v2674
      %v2676 = vpop.f32.mrb[0].mxu0
      %v2677 = vpop.f32.mrb[0].mxu0
      %v2678 = vadd.f32 0.0, %v2677
      %v2679 = vpop.f32.mrb[0].mxu0
      %2680 = vmatprep.mubr.bf16.mxu0 0
      %2681 = vmatmul.mubr.bf16.gmra.mrb[0].mxu0 %v2583
      %v2682 = vpop.f32.mrb[0].mxu0
      %v2683 = vadd.f32 0.0, %v2682
      %v2684 = vpop.f32.mrb[0].mxu0
      %v2685 = vpop.f32.mrb[0].mxu0
      %v2686 = vadd.f32 0.0, %v2685
      %v2687 = vpop.f32.mrb[0].mxu0
      %2688 = vmatprep.mubr.bf16.mxu0 0
      %2689 = vmatmul.mubr.bf16.gmra.mrb[0].mxu0 %v2586
      %v2690 = vpop.f32.mrb[0].mxu0
      %v2691 = vadd.f32 0.0, %v2690
      %v2692 = vpop.f32.mrb[0].mxu0
      %v2693 = vpop.f32.mrb[0].mxu0
      %v2694 = vadd.f32 0.0, %v2693
      %v2695 = vpop.f32.mrb[0].mxu0
      %2696 = vmatprep.mubr.bf16.mxu0 0
      %2697 = vmatmul.mubr.bf16.gmra.mrb[0].mxu0 %v2589
      %v2698 = vpop.f32.mrb[0].mxu0
      %v2699 = vadd.f32 0.0, %v2698
      %v2700 = vpop.f32.mrb[0].mxu0
      %v2701 = vpop.f32.mrb[0].mxu0
      %v2702 = vadd.f32 0.0, %v2701
      %v2703 = vpop.f32.mrb[0].mxu0
      %2704 = vmatprep.mubr.bf16.mxu0 0
      %2705 = vmatmul.mubr.bf16.gmra.mrb[0].mxu0 %v2592
      %v2706 = vpop.f32.mrb[0].mxu0
      %v2707 = vadd.f32 0.0, %v2706
      %v2708 = vpop.f32.mrb[0].mxu0
      %v2709 = vpop.f32.mrb[0].mxu0
      %v2710 = vadd.f32 0.0, %v2709
      %v2711 = vpop.f32.mrb[0].mxu0
      %2712 = vmatprep.mubr.bf16.mxu0 0
      %2713 = vmatmul.mubr.bf16.gmra.mrb[0].mxu0 %v2595
      %v2714 = vpop.f32.mrb[0].mxu0
      %v2715 = vadd.f32 0.0, %v2714
      %v2716 = vpop.f32.mrb[0].mxu0
      %v2717 = vpop.f32.mrb[0].mxu0
      %v2718 = vadd.f32 0.0, %v2717
      %v2719 = vpop.f32.mrb[0].mxu0
      %2720 = vmatprep.mubr.bf16.mxu0 0
      %2721 = vmatmul.mubr.bf16.gmra.mrb[0].mxu0 %v2598
      %v2722 = vpop.f32.mrb[0].mxu0
      %v2723 = vadd.f32 0.0, %v2722
      %v2724 = vpop.f32.mrb[0].mxu0
      %v2725 = vpop.f32.mrb[0].mxu0
      %v2726 = vadd.f32 0.0, %v2725
      %v2727 = vpop.f32.mrb[0].mxu0
      %2728 = vmatprep.mubr.bf16.mxu0 0
      %2729 = vmatmul.mubr.bf16.gmra.mrb[0].mxu0 %v2601
      %v2730 = vpop.f32.mrb[0].mxu0
      %v2731 = vadd.f32 0.0, %v2730
      %v2732 = vpop.f32.mrb[0].mxu0
      %v2733 = vpop.f32.mrb[0].mxu0
      %v2734 = vadd.f32 0.0, %v2733
      %v2735 = vpop.f32.mrb[0].mxu0
      %2736 = vmatprep.mubr.bf16.mxu0 0
      %2737 = vmatmul.mubr.bf16.gmra.mrb[0].mxu0 %v2604
      %v2738 = vpop.f32.mrb[0].mxu0
      %v2739 = vadd.f32 0.0, %v2738
      %v2740 = vpop.f32.mrb[0].mxu0
      %v2741 = vpop.f32.mrb[0].mxu0
      %v2742 = vadd.f32 0.0, %v2741
      %v2743 = vpop.f32.mrb[0].mxu0
      %2744 = vmatprep.mubr.bf16.mxu0 0
      %2745 = vmatmul.mubr.bf16.gmra.mrb[0].mxu0 %v2607
      %v2746 = vpop.f32.mrb[0].mxu0
      %v2747 = vadd.f32 0.0, %v2746
      %v2748 = vpop.f32.mrb[0].mxu0
      %v2749 = vpop.f32.mrb[0].mxu0
      %v2750 = vadd.f32 0.0, %v2749
      %v2751 = vpop.f32.mrb[0].mxu0
      %2752 = vmatprep.mubr.bf16.mxu0 0
      %2753 = vmatmul.mubr.bf16.gmra.mrb[0].mxu0 %v2610
      %v2754 = vpop.f32.mrb[0].mxu0
      %v2755 = vadd.f32 0.0, %v2754
      %v2756 = vpop.f32.mrb[0].mxu0
      %v2757 = vpop.f32.mrb[0].mxu0
      %v2758 = vadd.f32 0.0, %v2757
      %v2759 = vpop.f32.mrb[0].mxu0
      %2760 = vmatprep.mubr.bf16.mxu0 0
      %2761 = vmatmul.mubr.bf16.gmra.mrb[0].mxu0 %v2613
      %v2762 = vpop.f32.mrb[0].mxu0
      %v2763 = vadd.f32 0.0, %v2762
      %v2764 = vpop.f32.mrb[0].mxu0
      %v2765 = vpop.f32.mrb[0].mxu0
      %v2766 = vadd.f32 0.0, %v2765
      %v2767 = vpop.f32.mrb[0].mxu0
      %2768 = vmatprep.mubr.bf16.mxu0 0
      %2769 = vmatmul.mubr.bf16.gmra.mrb[0].mxu0 %v2616
      %v2770 = vpop.f32.mrb[0].mxu0
      %v2771 = vadd.f32 0.0, %v2770
      %v2772 = vpop.f32.mrb[0].mxu0
      %v2773 = vpop.f32.mrb[0].mxu0
      %v2774 = vadd.f32 0.0, %v2773
      %v2775 = vpop.f32.mrb[0].mxu0
      %2776 = vmatprep.mubr.bf16.mxu0 0
      %2777 = vmatmul.mubr.bf16.gmra.mrb[0].mxu0 %v2619
      %v2778 = vpop.f32.mrb[0].mxu0
      %v2779 = vadd.f32 0.0, %v2778
      %v2780 = vpop.f32.mrb[0].mxu0
      %v2781 = vpop.f32.mrb[0].mxu0
      %v2782 = vadd.f32 0.0, %v2781
      %v2783 = vpop.f32.mrb[0].mxu0
      %2784 = vdwg.mxu0
      %v2785 = vadd.f32 %v2490, %v2659
      %v2786 = vadd.f32 %v2491, %v2662
      %v2787 = vadd.f32 %v2492, %v2667
      %v2788 = vadd.f32 %v2493, %v2670
      %v2789 = vadd.f32 %v2494, %v2675
      %v2790 = vadd.f32 %v2495, %v2678
      %v2791 = vadd.f32 %v2496, %v2683
      %v2792 = vadd.f32 %v2497, %v2686
      %v2793 = vadd.f32 %v2498, %v2691
      %v2794 = vadd.f32 %v2499, %v2694
      %v2795 = vadd.f32 %v2500, %v2699
      %v2796 = vadd.f32 %v2501, %v2702
      %v2797 = vadd.f32 %v2502, %v2707
      %v2798 = vadd.f32 %v2503, %v2710
      %v2799 = vadd.f32 %v2504, %v2715
      %v2800 = vadd.f32 %v2505, %v2718
      %v2801 = vadd.f32 %v2506, %v2723
      %v2802 = vadd.f32 %v2507, %v2726
      %v2803 = vadd.f32 %v2508, %v2731
      %v2804 = vadd.f32 %v2509, %v2734
      %v2805 = vadd.f32 %v2510, %v2739
      %v2806 = vadd.f32 %v2511, %v2742
      %v2807 = vadd.f32 %v2512, %v2747
      %v2808 = vadd.f32 %v2513, %v2750
      %v2809 = vadd.f32 %v2514, %v2755
      %v2810 = vadd.f32 %v2515, %v2758
      %v2811 = vadd.f32 %v2516, %v2763
      %v2812 = vadd.f32 %v2517, %v2766
      %v2813 = vadd.f32 %v2518, %v2771
      %v2814 = vadd.f32 %v2519, %v2774
      %v2815 = vadd.f32 %v2520, %v2779
      %v2816 = vadd.f32 %v2521, %v2782
      %v2817 = vld [vmem:[%s213] sm:$0x1]
      %v2819 = vlaneseq
      %v2820 = vshrl.u32 %v2819, 7
      %v2821 = vsub.s32 0, %v2820
      %v2822 = vrot.slane %v2817, %v2821
      %v2824 = vadd.f32 %v2785, %v2822
      %v2825 = vadd.f32 %v2786, %v2822
      %v2826 = vadd.f32 %v2787, %v2822
      %v2827 = vadd.f32 %v2788, %v2822
      %v2828 = vadd.f32 %v2789, %v2822
      %v2829 = vadd.f32 %v2790, %v2822
      %v2830 = vadd.f32 %v2791, %v2822
      %v2831 = vadd.f32 %v2792, %v2822
      %v2832 = vadd.f32 %v2793, %v2822
      %v2833 = vadd.f32 %v2794, %v2822
      %v2834 = vadd.f32 %v2795, %v2822
      %v2835 = vadd.f32 %v2796, %v2822
      %v2836 = vadd.f32 %v2797, %v2822
      %v2837 = vadd.f32 %v2798, %v2822
      %v2838 = vadd.f32 %v2799, %v2822
      %v2839 = vadd.f32 %v2800, %v2822
      %v2840 = vadd.f32 %v2801, %v2822
      %v2841 = vadd.f32 %v2802, %v2822
      %v2842 = vadd.f32 %v2803, %v2822
      %v2843 = vadd.f32 %v2804, %v2822
      %v2844 = vadd.f32 %v2805, %v2822
      %v2845 = vadd.f32 %v2806, %v2822
      %v2846 = vadd.f32 %v2807, %v2822
      %v2847 = vadd.f32 %v2808, %v2822
      %v2848 = vadd.f32 %v2809, %v2822
      %v2849 = vadd.f32 %v2810, %v2822
      %v2850 = vadd.f32 %v2811, %v2822
      %v2851 = vadd.f32 %v2812, %v2822
      %v2852 = vadd.f32 %v2813, %v2822
      %v2853 = vadd.f32 %v2814, %v2822
      %v2854 = vadd.f32 %v2815, %v2822
      %v2855 = vadd.f32 %v2816, %v2822
      %v2856 = vmax.f32 %v2824, 0.0
      %v2857 = vmax.f32 %v2825, 0.0
      %v2858 = vmax.f32 %v2826, 0.0
      %v2859 = vmax.f32 %v2827, 0.0
      %v2860 = vmax.f32 %v2828, 0.0
      %v2861 = vmax.f32 %v2829, 0.0
      %v2862 = vmax.f32 %v2830, 0.0
      %v2863 = vmax.f32 %v2831, 0.0
      %v2864 = vmax.f32 %v2832, 0.0
      %v2865 = vmax.f32 %v2833, 0.0
      %v2866 = vmax.f32 %v2834, 0.0
      %v2867 = vmax.f32 %v2835, 0.0
      %v2868 = vmax.f32 %v2836, 0.0
      %v2869 = vmax.f32 %v2837, 0.0
      %v2870 = vmax.f32 %v2838, 0.0
      %v2871 = vmax.f32 %v2839, 0.0
      %v2872 = vmax.f32 %v2840, 0.0
      %v2873 = vmax.f32 %v2841, 0.0
      %v2874 = vmax.f32 %v2842, 0.0
      %v2875 = vmax.f32 %v2843, 0.0
      %v2876 = vmax.f32 %v2844, 0.0
      %v2877 = vmax.f32 %v2845, 0.0
      %v2878 = vmax.f32 %v2846, 0.0
      %v2879 = vmax.f32 %v2847, 0.0
      %v2880 = vmax.f32 %v2848, 0.0
      %v2881 = vmax.f32 %v2849, 0.0
      %v2882 = vmax.f32 %v2850, 0.0
      %v2883 = vmax.f32 %v2851, 0.0
      %v2884 = vmax.f32 %v2852, 0.0
      %v2885 = vmax.f32 %v2853, 0.0
      %v2886 = vmax.f32 %v2854, 0.0
      %v2887 = vmax.f32 %v2855, 0.0
      %2888 = vst [vmem:[%s221] sm:$0xff] %v2856
      %2889 = vst [vmem:[%s221 + $0x8] sm:$0xff] %v2857
      %2890 = vst [vmem:[%s221 + $0x10] sm:$0xff] %v2858
      %2891 = vst [vmem:[%s221 + $0x18] sm:$0xff] %v2859
      %2892 = vst [vmem:[%s221 + $0x20] sm:$0xff] %v2860
      %2893 = vst [vmem:[%s221 + $0x28] sm:$0xff] %v2861
      %2894 = vst [vmem:[%s221 + $0x30] sm:$0xff] %v2862
      %2895 = vst [vmem:[%s221 + $0x38] sm:$0xff] %v2863
      %2896 = vst [vmem:[%s221 + $0x40] sm:$0xff] %v2864
      %2897 = vst [vmem:[%s221 + $0x48] sm:$0xff] %v2865
      %2898 = vst [vmem:[%s221 + $0x50] sm:$0xff] %v2866
      %2899 = vst [vmem:[%s221 + $0x58] sm:$0xff] %v2867
      %2900 = vst [vmem:[%s221 + $0x60] sm:$0xff] %v2868
      %2901 = vst [vmem:[%s221 + $0x68] sm:$0xff] %v2869
      %2902 = vst [vmem:[%s221 + $0x70] sm:$0xff] %v2870
      %2903 = vst [vmem:[%s221 + $0x78] sm:$0xff] %v2871
      %2904 = vst [vmem:[%s221 + $0x80] sm:$0xff] %v2872
      %2905 = vst [vmem:[%s221 + $0x88] sm:$0xff] %v2873
      %2906 = vst [vmem:[%s221 + $0x90] sm:$0xff] %v2874
      %2907 = vst [vmem:[%s221 + $0x98] sm:$0xff] %v2875
      %2908 = vst [vmem:[%s221 + $0xa0] sm:$0xff] %v2876
      %2909 = vst [vmem:[%s221 + $0xa8] sm:$0xff] %v2877
      %2910 = vst [vmem:[%s221 + $0xb0] sm:$0xff] %v2878
      %2911 = vst [vmem:[%s221 + $0xb8] sm:$0xff] %v2879
      %2912 = vst [vmem:[%s221 + $0xc0] sm:$0xff] %v2880
      %2913 = vst [vmem:[%s221 + $0xc8] sm:$0xff] %v2881
      %2914 = vst [vmem:[%s221 + $0xd0] sm:$0xff] %v2882
      %2915 = vst [vmem:[%s221 + $0xd8] sm:$0xff] %v2883
      %2916 = vst [vmem:[%s221 + $0xe0] sm:$0xff] %v2884
      %2917 = vst [vmem:[%s221 + $0xe8] sm:$0xff] %v2885
      %2918 = vst [vmem:[%s221 + $0xf0] sm:$0xff] %v2886
      %2919 = vst [vmem:[%s221 + $0xf8] sm:$0xff] %v2887
      %p2920 = scmp.lt.s32.totalorder %s18, 1
      %s2921 = scalar_select %p2920, %s18, 1
      %p2922 = scmp.lt.s32.totalorder %s19, 0
      %s2923 = scalar_select %p2922, %s19, 0
      %s2924 = smul.addr %s2921, 32
      %s2925 = sadd.s32 %s2923, %s2924
      %s2926 = smul.addr %s2925, 8
      %s2927 = scalar_lea.vmem %s3, %s2926
      // Predicated region
      $region33: #{conv2d_block_forward.1} parent=31 // pred_check
        %p2928 = pneg %p124
      $region34: #{conv2d_block_forward.1} parent=31 // pred_check_branch
        %2930 = sbr.rel (%p2928) target = $region36
      $region35: #{conv2d_block_forward.1} parent=31 // pred_region
        _
      $region36: #{conv2d_block_forward.1} parent=31 // pred_fallthru
        _
    $region32: #{conv2d_block_forward.1} parent=5 // pred_fallthru
      _
    %p2931 = scmp.le.s32.totalorder 2, %s9
    // Predicated region
    $region37: #{conv2d_block_forward.1} parent=5 // pred_check
      %p2932 = pneg %p2931
    $region38: #{conv2d_block_forward.1} parent=5 // pred_check_branch
      %2934 = sbr.rel (%p2932) target = $region40
    $region39: #{conv2d_block_forward.1} parent=5 // pred_region
      %s2935 = ssub.s32 %s9, 2
      // Predicated region
      $region41: #{conv2d_block_forward.1} parent=39 // pred_check
        %p2936 = pneg %p130
      $region42: #{conv2d_block_forward.1} parent=39 // pred_check_branch
        %2938 = sbr.rel (%p2936) target = $region44
      $region43: #{conv2d_block_forward.1} parent=39 // pred_region
        %p2939 = scmp.lt.s32.totalorder %s20, 1
        %s2940 = scalar_select %p2939, %s20, 1
        %p2941 = scmp.lt.s32.totalorder %s21, 0
        %s2942 = scalar_select %p2941, %s21, 0
        %s2943 = smul.addr %s2940, 32
        %s2944 = sadd.s32 %s2942, %s2943
        %s2945 = smul.addr %s2944, 8
        %s2946 = scalar_lea.vmem %s3, %s2945
      $region44: #{conv2d_block_forward.1} parent=39 // pred_fallthru
        _
    $region40: #{conv2d_block_forward.1} parent=5 // pred_fallthru
      _
  $region6: #{conv2d_block_forward.1} parent=0 // loop_footer
    %s13 = sadd.s32 1, %s9
  $region7: #{conv2d_block_forward.1} parent=0 // loop_footer_branch
    %8 = sbr.rel target = $region3
  $region8: #{conv2d_block_forward.1} parent=0 // loop_exit
    _

</llo_original>
